<compile_context>
chip_gen: v6e
topology: v6e:2x2x1
jax: 0.10.0
libtpu: 0.0.40
codegen_flags: <defaults>
</compile_context>

<pallas_src>
import functools

import jax
import jax.numpy as jnp
import numpy as np
from jax.experimental import pallas as pl
from jax.experimental.pallas import tpu as pltpu

NUM_LAYERS = 6
INPUT_DIM = 8
HIDDEN_DIM = 32
BATCH = 2


def _round_up(x, m):
    return ((x + m - 1) // m) * m


# ---------------------------------------------------------------------------
# Kernel
# ---------------------------------------------------------------------------
def flow_kernel(x_ref, w1_ref, b1_ref, w2_ref, b2_ref, w3_ref, b3_ref,
                y_ref, logdet_ref):
    x = x_ref[...]                                   # (TB, D) fp32
    D = x.shape[1]
    scale_acc = jnp.zeros_like(x)                    # running scale sum (TB, D)

    for i in range(NUM_LAYERS):                      # static unroll, 3 dots/layer
        h = jnp.dot(x, w1_ref[i], preferred_element_type=jnp.float32) + b1_ref[i]
        h = jnp.maximum(h, 0.0)                      # ReLU
        h = jnp.dot(h, w2_ref[i], preferred_element_type=jnp.float32) + b2_ref[i]
        h = jnp.maximum(h, 0.0)                      # ReLU
        st = jnp.dot(h, w3_ref[i], preferred_element_type=jnp.float32) + b3_ref[i]
        # Fused output: cols [0:D] -> scale pre-activation, [D:2D] -> translate.
        # Masked columns are already exactly zero (folded into W3/b3), so
        # tanh(0)=0, exp(0)=1 preserves masked features; clamp(-3,3) after tanh
        # is a no-op and is omitted.
        scale = jnp.tanh(st[:, :D])
        translate = st[:, D:]
        x = x * jnp.exp(scale) + translate           # coupling update
        scale_acc = scale_acc + scale

    y_ref[...] = x
    logdet_ref[...] = jnp.sum(scale_acc, axis=1, keepdims=True)


# ---------------------------------------------------------------------------
# Wrapper
# ---------------------------------------------------------------------------
@functools.partial(jax.jit, static_argnames=("tb",))
def flow_forward(x, fused_params, *, tb=1024):
    """Forward pass (reverse=False) of SimpleNormalizingFlow."""
    B, D = x.shape
    w1, b1, w2, b2, w3, b3 = fused_params

    # Pad batch to a multiple of 8 sublanes / the batch tile.
    TB = min(tb, _round_up(max(B, 1), 8))
    padded_B = _round_up(B, TB)
    if padded_B != B:
        x = jnp.pad(x, ((0, padded_B - B), (0, 0)))

    resident = lambda i: (0, 0, 0)                   # weights resident across grid

    y, logdet = pl.pallas_call(
        flow_kernel,
        out_shape=(jax.ShapeDtypeStruct((padded_B, D), jnp.float32),
                   jax.ShapeDtypeStruct((padded_B, 1), jnp.float32)),
        grid_spec=pltpu.PrefetchScalarGridSpec(
            num_scalar_prefetch=0,
            grid=(padded_B // TB,),
            in_specs=[
                pl.BlockSpec((TB, D), lambda i: (i, 0)),
                pl.BlockSpec(w1.shape, resident),
                pl.BlockSpec(b1.shape, resident),
                pl.BlockSpec(w2.shape, resident),
                pl.BlockSpec(b2.shape, resident),
                pl.BlockSpec(w3.shape, resident),
                pl.BlockSpec(b3.shape, resident),
            ],
            out_specs=(
                pl.BlockSpec((TB, D), lambda i: (i, 0)),
                pl.BlockSpec((TB, 1), lambda i: (i, 0)),
            ),
        ),
        compiler_params=pltpu.CompilerParams(
            dimension_semantics=("parallel",)),      # megacore-shard batch (v7x)
    )(x, w1, b1, w2, b2, w3, b3)
    return y[:B], logdet[:B, 0]


# ---------------------------------------------------------------------------
# Parameter init (PyTorch-style) and fusion/mask-folding
# ---------------------------------------------------------------------------
def init_params(key, input_dim=INPUT_DIM, hidden_dim=HIDDEN_DIM,
                num_layers=NUM_LAYERS):
    """Deterministic init mimicking nn.Linear default (uniform +-1/sqrt(fan_in)).
    Weights stored as (in, out) so the kernel does x @ W."""
    def linear(k, fan_in, fan_out):
        kw, kb = jax.random.split(k)
        bound = 1.0 / np.sqrt(fan_in)
        w = jax.random.uniform(kw, (fan_in, fan_out), jnp.float32, -bound, bound)
        b = jax.random.uniform(kb, (fan_out,), jnp.float32, -bound, bound)
        return w, b

    sw1, sb1, sw2, sb2, sw3, sb3 = [], [], [], [], [], []
    tw1, tb1, tw2, tb2, tw3, tb3 = [], [], [], [], [], []
    masks = []
    keys = jax.random.split(key, num_layers * 6)
    base_mask = (np.arange(input_dim) % 2).astype(np.float32)
    for i in range(num_layers):
        m = base_mask if i % 2 == 0 else 1.0 - base_mask
        masks.append(m)
        k = keys[i * 6:(i + 1) * 6]
        w, b = linear(k[0], input_dim, hidden_dim); sw1.append(w); sb1.append(b)
        w, b = linear(k[1], hidden_dim, hidden_dim); sw2.append(w); sb2.append(b)
        w, b = linear(k[2], hidden_dim, input_dim); sw3.append(w); sb3.append(b)
        w, b = linear(k[3], input_dim, hidden_dim); tw1.append(w); tb1.append(b)
        w, b = linear(k[4], hidden_dim, hidden_dim); tw2.append(w); tb2.append(b)
        w, b = linear(k[5], hidden_dim, input_dim); tw3.append(w); tb3.append(b)

    stack = lambda xs: jnp.stack([jnp.asarray(x) for x in xs], axis=0)
    return (stack(masks),
            stack(sw1), stack(sb1), stack(sw2), stack(sb2), stack(sw3), stack(sb3),
            stack(tw1), stack(tb1), stack(tw2), stack(tb2), stack(tw3), stack(tb3))


def fuse_params(params):
    """Fuse scale/translate nets into one MLP per layer and fold the coupling
    masks into W1 (input rows) and W3/b3 (output columns).  Exact: tanh(0)=0,
    exp(0)=1 so masked features are preserved bit-for-bit."""
    (masks, sw1, sb1, sw2, sb2, sw3, sb3,
     tw1, tb1, tw2, tb2, tw3, tb3) = params
    L, D, H = sw1.shape
    inv = 1.0 - masks                                            # (L, D)

    # W1: concat along output axis, mask folded into input rows.
    w1 = jnp.concatenate([sw1, tw1], axis=-1) * masks[:, :, None]   # (L, D, 2H)
    b1 = jnp.concatenate([sb1, tb1], axis=-1)[:, None, :]            # (L, 1, 2H)

    # W2: block-diagonal (L, 2H, 2H).
    zhh = jnp.zeros((L, H, H), jnp.float32)
    w2 = jnp.concatenate([jnp.concatenate([sw2, zhh], axis=-1),
                          jnp.concatenate([zhh, tw2], axis=-1)], axis=1)
    b2 = jnp.concatenate([sb2, tb2], axis=-1)[:, None, :]            # (L, 1, 2H)

    # W3: block structure (L, 2H, 2D); output mask (1-m) folded into columns.
    zhd = jnp.zeros((L, H, D), jnp.float32)
    sw3m = sw3 * inv[:, None, :]
    tw3m = tw3 * inv[:, None, :]
    w3 = jnp.concatenate([jnp.concatenate([sw3m, zhd], axis=-1),
                          jnp.concatenate([zhd, tw3m], axis=-1)], axis=1)
    b3 = jnp.concatenate([sb3 * inv, tb3 * inv], axis=-1)[:, None, :]  # (L, 1, 2D)
    return w1, b1, w2, b2, w3, b3


# ---------------------------------------------------------------------------
# Pure-JAX reference of the original (unfused) PyTorch forward
# ---------------------------------------------------------------------------
def flow_forward_ref(x, params):
    (masks, sw1, sb1, sw2, sb2, sw3, sb3,
     tw1, tb1, tw2, tb2, tw3, tb3) = params
    logdet = jnp.zeros((x.shape[0],), jnp.float32)
    for i in range(NUM_LAYERS):
        m = masks[i]
        mx = x * m
        def mlp(w1, b1, w2, b2, w3, b3):
            h = jnp.maximum(mx @ w1 + b1, 0.0)
            h = jnp.maximum(h @ w2 + b2, 0.0)
            return h @ w3 + b3
        scale = jnp.tanh(mlp(sw1[i], sb1[i], sw2[i], sb2[i], sw3[i], sb3[i])) * (1 - m)
        translate = mlp(tw1[i], tb1[i], tw2[i], tb2[i], tw3[i], tb3[i]) * (1 - m)
        scale = jnp.clip(scale, -3.0, 3.0)
        x = x * jnp.exp(scale) + translate
        logdet = logdet + scale.sum(axis=1)
    return x, logdet


# TODO(synk): reverse=True path, sample(), log_prob() are host-side methods of
# the PyTorch module and are not implemented as kernels here (forward only).

if __name__ == "__main__":
    key = jax.random.PRNGKey(0)
    kx, kp = jax.random.split(key)
    x = jax.random.normal(kx, (BATCH, INPUT_DIM), jnp.float32)
    params = init_params(kp)
    fused = fuse_params(params)

    y, logdet = flow_forward(x, fused)
    jax.block_until_ready((y, logdet))

    y_ref, logdet_ref = flow_forward_ref(x, params)
    np.testing.assert_allclose(np.asarray(y), np.asarray(y_ref), rtol=1e-5, atol=1e-5)
    np.testing.assert_allclose(np.asarray(logdet), np.asarray(logdet_ref),
                               rtol=1e-5, atol=1e-5)
    print("KERNEL_OK")
</pallas_src>

<mosaic_0001>
module attributes {stable_mosaic.version = 11 : i64} {
  func.func @flow_kernel(%arg0: i32, %arg1: memref<8x8xf32, #tpu.memory_space<vmem>>, %arg2: memref<6x8x64xf32, #tpu.memory_space<vmem>>, %arg3: memref<6x1x64xf32, #tpu.memory_space<vmem>>, %arg4: memref<6x64x64xf32, #tpu.memory_space<vmem>>, %arg5: memref<6x1x64xf32, #tpu.memory_space<vmem>>, %arg6: memref<6x64x16xf32, #tpu.memory_space<vmem>>, %arg7: memref<6x1x16xf32, #tpu.memory_space<vmem>>, %arg8: memref<8x8xf32, #tpu.memory_space<vmem>>, %arg9: memref<8x1xf32, #tpu.memory_space<vmem>>) attributes {dimension_semantics = [#tpu.dimension_semantics<parallel>], iteration_bounds = array<i64: 1>, scalar_prefetch = 0 : i64, scratch_operands = 0 : i64, tpu.core_type = #tpu.core_type<tc>, window_params = [{transform_indices = @transform_0, window_bounds = array<i64: 8, 8>}, {pipeline_mode = #tpu.pipeline_mode<synchronous>, transform_indices = @transform_1, window_bounds = array<i64: 6, 8, 64>}, {pipeline_mode = #tpu.pipeline_mode<synchronous>, transform_indices = @transform_2, window_bounds = array<i64: 6, 1, 64>}, {pipeline_mode = #tpu.pipeline_mode<synchronous>, transform_indices = @transform_3, window_bounds = array<i64: 6, 64, 64>}, {pipeline_mode = #tpu.pipeline_mode<synchronous>, transform_indices = @transform_4, window_bounds = array<i64: 6, 1, 64>}, {pipeline_mode = #tpu.pipeline_mode<synchronous>, transform_indices = @transform_5, window_bounds = array<i64: 6, 64, 16>}, {pipeline_mode = #tpu.pipeline_mode<synchronous>, transform_indices = @transform_6, window_bounds = array<i64: 6, 1, 16>}, {transform_indices = @transform_7, window_bounds = array<i64: 8, 8>}, {transform_indices = @transform_8, window_bounds = array<i64: 8, 1>}]} {
    %c0 = arith.constant 0 : index
    %c0_0 = arith.constant 0 : index
    %0 = vector.load %arg1[%c0, %c0_0] : memref<8x8xf32, #tpu.memory_space<vmem>>, vector<8x8xf32>
    %cst = arith.constant 0.000000e+00 : f32
    %1 = vector.broadcast %cst : f32 to vector<8x8xf32>
    %c0_1 = arith.constant 0 : index
    %c0_2 = arith.constant 0 : index
    %c0_3 = arith.constant 0 : index
    %2 = vector.load %arg2[%c0_1, %c0_2, %c0_3] : memref<6x8x64xf32, #tpu.memory_space<vmem>>, vector<1x8x64xf32>
    %3 = vector.shape_cast %2 : vector<1x8x64xf32> to vector<8x64xf32>
    %cst_4 = arith.constant dense<0.000000e+00> : vector<8x64xf32>
    %4 = tpu.matmul %0, %3, %cst_4 {dimension_numbers = #tpu.dot_dimension_numbers<[1], [0], [0], [1], [0, 0, 1, 1], [], []>} : vector<8x8xf32>, vector<8x64xf32>, vector<8x64xf32> -> vector<8x64xf32>
    %c0_5 = arith.constant 0 : index
    %c0_6 = arith.constant 0 : index
    %c0_7 = arith.constant 0 : index
    %5 = vector.load %arg3[%c0_5, %c0_6, %c0_7] : memref<6x1x64xf32, #tpu.memory_space<vmem>>, vector<1x1x64xf32>
    %6 = vector.shape_cast %5 : vector<1x1x64xf32> to vector<1x64xf32>
    %7 = vector.broadcast %6 : vector<1x64xf32> to vector<8x64xf32>
    %8 = arith.addf %4, %7 : vector<8x64xf32>
    %cst_8 = arith.constant 0.000000e+00 : f32
    %9 = vector.broadcast %cst_8 : f32 to vector<8x64xf32>
    %10 = arith.maximumf %8, %9 : vector<8x64xf32>
    %c0_9 = arith.constant 0 : index
    %c0_10 = arith.constant 0 : index
    %c0_11 = arith.constant 0 : index
    %11 = vector.load %arg4[%c0_9, %c0_10, %c0_11] : memref<6x64x64xf32, #tpu.memory_space<vmem>>, vector<1x64x64xf32>
    %12 = vector.shape_cast %11 : vector<1x64x64xf32> to vector<64x64xf32>
    %cst_12 = arith.constant dense<0.000000e+00> : vector<8x64xf32>
    %13 = tpu.matmul %10, %12, %cst_12 {dimension_numbers = #tpu.dot_dimension_numbers<[1], [0], [0], [1], [0, 0, 1, 1], [], []>} : vector<8x64xf32>, vector<64x64xf32>, vector<8x64xf32> -> vector<8x64xf32>
    %c0_13 = arith.constant 0 : index
    %c0_14 = arith.constant 0 : index
    %c0_15 = arith.constant 0 : index
    %14 = vector.load %arg5[%c0_13, %c0_14, %c0_15] : memref<6x1x64xf32, #tpu.memory_space<vmem>>, vector<1x1x64xf32>
    %15 = vector.shape_cast %14 : vector<1x1x64xf32> to vector<1x64xf32>
    %16 = vector.broadcast %15 : vector<1x64xf32> to vector<8x64xf32>
    %17 = arith.addf %13, %16 : vector<8x64xf32>
    %cst_16 = arith.constant 0.000000e+00 : f32
    %18 = vector.broadcast %cst_16 : f32 to vector<8x64xf32>
    %19 = arith.maximumf %17, %18 : vector<8x64xf32>
    %c0_17 = arith.constant 0 : index
    %c0_18 = arith.constant 0 : index
    %c0_19 = arith.constant 0 : index
    %20 = vector.load %arg6[%c0_17, %c0_18, %c0_19] : memref<6x64x16xf32, #tpu.memory_space<vmem>>, vector<1x64x16xf32>
    %21 = vector.shape_cast %20 : vector<1x64x16xf32> to vector<64x16xf32>
    %cst_20 = arith.constant dense<0.000000e+00> : vector<8x16xf32>
    %22 = tpu.matmul %19, %21, %cst_20 {dimension_numbers = #tpu.dot_dimension_numbers<[1], [0], [0], [1], [0, 0, 1, 1], [], []>} : vector<8x64xf32>, vector<64x16xf32>, vector<8x16xf32> -> vector<8x16xf32>
    %c0_21 = arith.constant 0 : index
    %c0_22 = arith.constant 0 : index
    %c0_23 = arith.constant 0 : index
    %23 = vector.load %arg7[%c0_21, %c0_22, %c0_23] : memref<6x1x16xf32, #tpu.memory_space<vmem>>, vector<1x1x16xf32>
    %24 = vector.shape_cast %23 : vector<1x1x16xf32> to vector<1x16xf32>
    %25 = vector.broadcast %24 : vector<1x16xf32> to vector<8x16xf32>
    %26 = arith.addf %22, %25 : vector<8x16xf32>
    %27 = vector.extract_strided_slice %26 {offsets = [0, 0], sizes = [8, 8], strides = [1, 1]} : vector<8x16xf32> to vector<8x8xf32>
    %28 = math.tanh %27 : vector<8x8xf32>
    %29 = vector.extract_strided_slice %26 {offsets = [0, 8], sizes = [8, 8], strides = [1, 1]} : vector<8x16xf32> to vector<8x8xf32>
    %30 = math.exp %28 : vector<8x8xf32>
    %31 = arith.mulf %0, %30 : vector<8x8xf32>
    %32 = arith.addf %31, %29 : vector<8x8xf32>
    %33 = arith.addf %1, %28 : vector<8x8xf32>
    %c1 = arith.constant 1 : index
    %c0_24 = arith.constant 0 : index
    %c0_25 = arith.constant 0 : index
    %34 = vector.load %arg2[%c1, %c0_24, %c0_25] : memref<6x8x64xf32, #tpu.memory_space<vmem>>, vector<1x8x64xf32>
    %35 = vector.shape_cast %34 : vector<1x8x64xf32> to vector<8x64xf32>
    %cst_26 = arith.constant dense<0.000000e+00> : vector<8x64xf32>
    %36 = tpu.matmul %32, %35, %cst_26 {dimension_numbers = #tpu.dot_dimension_numbers<[1], [0], [0], [1], [0, 0, 1, 1], [], []>} : vector<8x8xf32>, vector<8x64xf32>, vector<8x64xf32> -> vector<8x64xf32>
    %c1_27 = arith.constant 1 : index
    %c0_28 = arith.constant 0 : index
    %c0_29 = arith.constant 0 : index
    %37 = vector.load %arg3[%c1_27, %c0_28, %c0_29] : memref<6x1x64xf32, #tpu.memory_space<vmem>>, vector<1x1x64xf32>
    %38 = vector.shape_cast %37 : vector<1x1x64xf32> to vector<1x64xf32>
    %39 = vector.broadcast %38 : vector<1x64xf32> to vector<8x64xf32>
    %40 = arith.addf %36, %39 : vector<8x64xf32>
    %cst_30 = arith.constant 0.000000e+00 : f32
    %41 = vector.broadcast %cst_30 : f32 to vector<8x64xf32>
    %42 = arith.maximumf %40, %41 : vector<8x64xf32>
    %c1_31 = arith.constant 1 : index
    %c0_32 = arith.constant 0 : index
    %c0_33 = arith.constant 0 : index
    %43 = vector.load %arg4[%c1_31, %c0_32, %c0_33] : memref<6x64x64xf32, #tpu.memory_space<vmem>>, vector<1x64x64xf32>
    %44 = vector.shape_cast %43 : vector<1x64x64xf32> to vector<64x64xf32>
    %cst_34 = arith.constant dense<0.000000e+00> : vector<8x64xf32>
    %45 = tpu.matmul %42, %44, %cst_34 {dimension_numbers = #tpu.dot_dimension_numbers<[1], [0], [0], [1], [0, 0, 1, 1], [], []>} : vector<8x64xf32>, vector<64x64xf32>, vector<8x64xf32> -> vector<8x64xf32>
    %c1_35 = arith.constant 1 : index
    %c0_36 = arith.constant 0 : index
    %c0_37 = arith.constant 0 : index
    %46 = vector.load %arg5[%c1_35, %c0_36, %c0_37] : memref<6x1x64xf32, #tpu.memory_space<vmem>>, vector<1x1x64xf32>
    %47 = vector.shape_cast %46 : vector<1x1x64xf32> to vector<1x64xf32>
    %48 = vector.broadcast %47 : vector<1x64xf32> to vector<8x64xf32>
    %49 = arith.addf %45, %48 : vector<8x64xf32>
    %cst_38 = arith.constant 0.000000e+00 : f32
    %50 = vector.broadcast %cst_38 : f32 to vector<8x64xf32>
    %51 = arith.maximumf %49, %50 : vector<8x64xf32>
    %c1_39 = arith.constant 1 : index
    %c0_40 = arith.constant 0 : index
    %c0_41 = arith.constant 0 : index
    %52 = vector.load %arg6[%c1_39, %c0_40, %c0_41] : memref<6x64x16xf32, #tpu.memory_space<vmem>>, vector<1x64x16xf32>
    %53 = vector.shape_cast %52 : vector<1x64x16xf32> to vector<64x16xf32>
    %cst_42 = arith.constant dense<0.000000e+00> : vector<8x16xf32>
    %54 = tpu.matmul %51, %53, %cst_42 {dimension_numbers = #tpu.dot_dimension_numbers<[1], [0], [0], [1], [0, 0, 1, 1], [], []>} : vector<8x64xf32>, vector<64x16xf32>, vector<8x16xf32> -> vector<8x16xf32>
    %c1_43 = arith.constant 1 : index
    %c0_44 = arith.constant 0 : index
    %c0_45 = arith.constant 0 : index
    %55 = vector.load %arg7[%c1_43, %c0_44, %c0_45] : memref<6x1x16xf32, #tpu.memory_space<vmem>>, vector<1x1x16xf32>
    %56 = vector.shape_cast %55 : vector<1x1x16xf32> to vector<1x16xf32>
    %57 = vector.broadcast %56 : vector<1x16xf32> to vector<8x16xf32>
    %58 = arith.addf %54, %57 : vector<8x16xf32>
    %59 = vector.extract_strided_slice %58 {offsets = [0, 0], sizes = [8, 8], strides = [1, 1]} : vector<8x16xf32> to vector<8x8xf32>
    %60 = math.tanh %59 : vector<8x8xf32>
    %61 = vector.extract_strided_slice %58 {offsets = [0, 8], sizes = [8, 8], strides = [1, 1]} : vector<8x16xf32> to vector<8x8xf32>
    %62 = math.exp %60 : vector<8x8xf32>
    %63 = arith.mulf %32, %62 : vector<8x8xf32>
    %64 = arith.addf %63, %61 : vector<8x8xf32>
    %65 = arith.addf %33, %60 : vector<8x8xf32>
    %c2 = arith.constant 2 : index
    %c0_46 = arith.constant 0 : index
    %c0_47 = arith.constant 0 : index
    %66 = vector.load %arg2[%c2, %c0_46, %c0_47] : memref<6x8x64xf32, #tpu.memory_space<vmem>>, vector<1x8x64xf32>
    %67 = vector.shape_cast %66 : vector<1x8x64xf32> to vector<8x64xf32>
    %cst_48 = arith.constant dense<0.000000e+00> : vector<8x64xf32>
    %68 = tpu.matmul %64, %67, %cst_48 {dimension_numbers = #tpu.dot_dimension_numbers<[1], [0], [0], [1], [0, 0, 1, 1], [], []>} : vector<8x8xf32>, vector<8x64xf32>, vector<8x64xf32> -> vector<8x64xf32>
    %c2_49 = arith.constant 2 : index
    %c0_50 = arith.constant 0 : index
    %c0_51 = arith.constant 0 : index
    %69 = vector.load %arg3[%c2_49, %c0_50, %c0_51] : memref<6x1x64xf32, #tpu.memory_space<vmem>>, vector<1x1x64xf32>
    %70 = vector.shape_cast %69 : vector<1x1x64xf32> to vector<1x64xf32>
    %71 = vector.broadcast %70 : vector<1x64xf32> to vector<8x64xf32>
    %72 = arith.addf %68, %71 : vector<8x64xf32>
    %cst_52 = arith.constant 0.000000e+00 : f32
    %73 = vector.broadcast %cst_52 : f32 to vector<8x64xf32>
    %74 = arith.maximumf %72, %73 : vector<8x64xf32>
    %c2_53 = arith.constant 2 : index
    %c0_54 = arith.constant 0 : index
    %c0_55 = arith.constant 0 : index
    %75 = vector.load %arg4[%c2_53, %c0_54, %c0_55] : memref<6x64x64xf32, #tpu.memory_space<vmem>>, vector<1x64x64xf32>
    %76 = vector.shape_cast %75 : vector<1x64x64xf32> to vector<64x64xf32>
    %cst_56 = arith.constant dense<0.000000e+00> : vector<8x64xf32>
    %77 = tpu.matmul %74, %76, %cst_56 {dimension_numbers = #tpu.dot_dimension_numbers<[1], [0], [0], [1], [0, 0, 1, 1], [], []>} : vector<8x64xf32>, vector<64x64xf32>, vector<8x64xf32> -> vector<8x64xf32>
    %c2_57 = arith.constant 2 : index
    %c0_58 = arith.constant 0 : index
    %c0_59 = arith.constant 0 : index
    %78 = vector.load %arg5[%c2_57, %c0_58, %c0_59] : memref<6x1x64xf32, #tpu.memory_space<vmem>>, vector<1x1x64xf32>
    %79 = vector.shape_cast %78 : vector<1x1x64xf32> to vector<1x64xf32>
    %80 = vector.broadcast %79 : vector<1x64xf32> to vector<8x64xf32>
    %81 = arith.addf %77, %80 : vector<8x64xf32>
    %cst_60 = arith.constant 0.000000e+00 : f32
    %82 = vector.broadcast %cst_60 : f32 to vector<8x64xf32>
    %83 = arith.maximumf %81, %82 : vector<8x64xf32>
    %c2_61 = arith.constant 2 : index
    %c0_62 = arith.constant 0 : index
    %c0_63 = arith.constant 0 : index
    %84 = vector.load %arg6[%c2_61, %c0_62, %c0_63] : memref<6x64x16xf32, #tpu.memory_space<vmem>>, vector<1x64x16xf32>
    %85 = vector.shape_cast %84 : vector<1x64x16xf32> to vector<64x16xf32>
    %cst_64 = arith.constant dense<0.000000e+00> : vector<8x16xf32>
    %86 = tpu.matmul %83, %85, %cst_64 {dimension_numbers = #tpu.dot_dimension_numbers<[1], [0], [0], [1], [0, 0, 1, 1], [], []>} : vector<8x64xf32>, vector<64x16xf32>, vector<8x16xf32> -> vector<8x16xf32>
    %c2_65 = arith.constant 2 : index
    %c0_66 = arith.constant 0 : index
    %c0_67 = arith.constant 0 : index
    %87 = vector.load %arg7[%c2_65, %c0_66, %c0_67] : memref<6x1x16xf32, #tpu.memory_space<vmem>>, vector<1x1x16xf32>
    %88 = vector.shape_cast %87 : vector<1x1x16xf32> to vector<1x16xf32>
    %89 = vector.broadcast %88 : vector<1x16xf32> to vector<8x16xf32>
    %90 = arith.addf %86, %89 : vector<8x16xf32>
    %91 = vector.extract_strided_slice %90 {offsets = [0, 0], sizes = [8, 8], strides = [1, 1]} : vector<8x16xf32> to vector<8x8xf32>
    %92 = math.tanh %91 : vector<8x8xf32>
    %93 = vector.extract_strided_slice %90 {offsets = [0, 8], sizes = [8, 8], strides = [1, 1]} : vector<8x16xf32> to vector<8x8xf32>
    %94 = math.exp %92 : vector<8x8xf32>
    %95 = arith.mulf %64, %94 : vector<8x8xf32>
    %96 = arith.addf %95, %93 : vector<8x8xf32>
    %97 = arith.addf %65, %92 : vector<8x8xf32>
    %c3 = arith.constant 3 : index
    %c0_68 = arith.constant 0 : index
    %c0_69 = arith.constant 0 : index
    %98 = vector.load %arg2[%c3, %c0_68, %c0_69] : memref<6x8x64xf32, #tpu.memory_space<vmem>>, vector<1x8x64xf32>
    %99 = vector.shape_cast %98 : vector<1x8x64xf32> to vector<8x64xf32>
    %cst_70 = arith.constant dense<0.000000e+00> : vector<8x64xf32>
    %100 = tpu.matmul %96, %99, %cst_70 {dimension_numbers = #tpu.dot_dimension_numbers<[1], [0], [0], [1], [0, 0, 1, 1], [], []>} : vector<8x8xf32>, vector<8x64xf32>, vector<8x64xf32> -> vector<8x64xf32>
    %c3_71 = arith.constant 3 : index
    %c0_72 = arith.constant 0 : index
    %c0_73 = arith.constant 0 : index
    %101 = vector.load %arg3[%c3_71, %c0_72, %c0_73] : memref<6x1x64xf32, #tpu.memory_space<vmem>>, vector<1x1x64xf32>
    %102 = vector.shape_cast %101 : vector<1x1x64xf32> to vector<1x64xf32>
    %103 = vector.broadcast %102 : vector<1x64xf32> to vector<8x64xf32>
    %104 = arith.addf %100, %103 : vector<8x64xf32>
    %cst_74 = arith.constant 0.000000e+00 : f32
    %105 = vector.broadcast %cst_74 : f32 to vector<8x64xf32>
    %106 = arith.maximumf %104, %105 : vector<8x64xf32>
    %c3_75 = arith.constant 3 : index
    %c0_76 = arith.constant 0 : index
    %c0_77 = arith.constant 0 : index
    %107 = vector.load %arg4[%c3_75, %c0_76, %c0_77] : memref<6x64x64xf32, #tpu.memory_space<vmem>>, vector<1x64x64xf32>
    %108 = vector.shape_cast %107 : vector<1x64x64xf32> to vector<64x64xf32>
    %cst_78 = arith.constant dense<0.000000e+00> : vector<8x64xf32>
    %109 = tpu.matmul %106, %108, %cst_78 {dimension_numbers = #tpu.dot_dimension_numbers<[1], [0], [0], [1], [0, 0, 1, 1], [], []>} : vector<8x64xf32>, vector<64x64xf32>, vector<8x64xf32> -> vector<8x64xf32>
    %c3_79 = arith.constant 3 : index
    %c0_80 = arith.constant 0 : index
    %c0_81 = arith.constant 0 : index
    %110 = vector.load %arg5[%c3_79, %c0_80, %c0_81] : memref<6x1x64xf32, #tpu.memory_space<vmem>>, vector<1x1x64xf32>
    %111 = vector.shape_cast %110 : vector<1x1x64xf32> to vector<1x64xf32>
    %112 = vector.broadcast %111 : vector<1x64xf32> to vector<8x64xf32>
    %113 = arith.addf %109, %112 : vector<8x64xf32>
    %cst_82 = arith.constant 0.000000e+00 : f32
    %114 = vector.broadcast %cst_82 : f32 to vector<8x64xf32>
    %115 = arith.maximumf %113, %114 : vector<8x64xf32>
    %c3_83 = arith.constant 3 : index
    %c0_84 = arith.constant 0 : index
    %c0_85 = arith.constant 0 : index
    %116 = vector.load %arg6[%c3_83, %c0_84, %c0_85] : memref<6x64x16xf32, #tpu.memory_space<vmem>>, vector<1x64x16xf32>
    %117 = vector.shape_cast %116 : vector<1x64x16xf32> to vector<64x16xf32>
    %cst_86 = arith.constant dense<0.000000e+00> : vector<8x16xf32>
    %118 = tpu.matmul %115, %117, %cst_86 {dimension_numbers = #tpu.dot_dimension_numbers<[1], [0], [0], [1], [0, 0, 1, 1], [], []>} : vector<8x64xf32>, vector<64x16xf32>, vector<8x16xf32> -> vector<8x16xf32>
    %c3_87 = arith.constant 3 : index
    %c0_88 = arith.constant 0 : index
    %c0_89 = arith.constant 0 : index
    %119 = vector.load %arg7[%c3_87, %c0_88, %c0_89] : memref<6x1x16xf32, #tpu.memory_space<vmem>>, vector<1x1x16xf32>
    %120 = vector.shape_cast %119 : vector<1x1x16xf32> to vector<1x16xf32>
    %121 = vector.broadcast %120 : vector<1x16xf32> to vector<8x16xf32>
    %122 = arith.addf %118, %121 : vector<8x16xf32>
    %123 = vector.extract_strided_slice %122 {offsets = [0, 0], sizes = [8, 8], strides = [1, 1]} : vector<8x16xf32> to vector<8x8xf32>
    %124 = math.tanh %123 : vector<8x8xf32>
    %125 = vector.extract_strided_slice %122 {offsets = [0, 8], sizes = [8, 8], strides = [1, 1]} : vector<8x16xf32> to vector<8x8xf32>
    %126 = math.exp %124 : vector<8x8xf32>
    %127 = arith.mulf %96, %126 : vector<8x8xf32>
    %128 = arith.addf %127, %125 : vector<8x8xf32>
    %129 = arith.addf %97, %124 : vector<8x8xf32>
    %c4 = arith.constant 4 : index
    %c0_90 = arith.constant 0 : index
    %c0_91 = arith.constant 0 : index
    %130 = vector.load %arg2[%c4, %c0_90, %c0_91] : memref<6x8x64xf32, #tpu.memory_space<vmem>>, vector<1x8x64xf32>
    %131 = vector.shape_cast %130 : vector<1x8x64xf32> to vector<8x64xf32>
    %cst_92 = arith.constant dense<0.000000e+00> : vector<8x64xf32>
    %132 = tpu.matmul %128, %131, %cst_92 {dimension_numbers = #tpu.dot_dimension_numbers<[1], [0], [0], [1], [0, 0, 1, 1], [], []>} : vector<8x8xf32>, vector<8x64xf32>, vector<8x64xf32> -> vector<8x64xf32>
    %c4_93 = arith.constant 4 : index
    %c0_94 = arith.constant 0 : index
    %c0_95 = arith.constant 0 : index
    %133 = vector.load %arg3[%c4_93, %c0_94, %c0_95] : memref<6x1x64xf32, #tpu.memory_space<vmem>>, vector<1x1x64xf32>
    %134 = vector.shape_cast %133 : vector<1x1x64xf32> to vector<1x64xf32>
    %135 = vector.broadcast %134 : vector<1x64xf32> to vector<8x64xf32>
    %136 = arith.addf %132, %135 : vector<8x64xf32>
    %cst_96 = arith.constant 0.000000e+00 : f32
    %137 = vector.broadcast %cst_96 : f32 to vector<8x64xf32>
    %138 = arith.maximumf %136, %137 : vector<8x64xf32>
    %c4_97 = arith.constant 4 : index
    %c0_98 = arith.constant 0 : index
    %c0_99 = arith.constant 0 : index
    %139 = vector.load %arg4[%c4_97, %c0_98, %c0_99] : memref<6x64x64xf32, #tpu.memory_space<vmem>>, vector<1x64x64xf32>
    %140 = vector.shape_cast %139 : vector<1x64x64xf32> to vector<64x64xf32>
    %cst_100 = arith.constant dense<0.000000e+00> : vector<8x64xf32>
    %141 = tpu.matmul %138, %140, %cst_100 {dimension_numbers = #tpu.dot_dimension_numbers<[1], [0], [0], [1], [0, 0, 1, 1], [], []>} : vector<8x64xf32>, vector<64x64xf32>, vector<8x64xf32> -> vector<8x64xf32>
    %c4_101 = arith.constant 4 : index
    %c0_102 = arith.constant 0 : index
    %c0_103 = arith.constant 0 : index
    %142 = vector.load %arg5[%c4_101, %c0_102, %c0_103] : memref<6x1x64xf32, #tpu.memory_space<vmem>>, vector<1x1x64xf32>
    %143 = vector.shape_cast %142 : vector<1x1x64xf32> to vector<1x64xf32>
    %144 = vector.broadcast %143 : vector<1x64xf32> to vector<8x64xf32>
    %145 = arith.addf %141, %144 : vector<8x64xf32>
    %cst_104 = arith.constant 0.000000e+00 : f32
    %146 = vector.broadcast %cst_104 : f32 to vector<8x64xf32>
    %147 = arith.maximumf %145, %146 : vector<8x64xf32>
    %c4_105 = arith.constant 4 : index
    %c0_106 = arith.constant 0 : index
    %c0_107 = arith.constant 0 : index
    %148 = vector.load %arg6[%c4_105, %c0_106, %c0_107] : memref<6x64x16xf32, #tpu.memory_space<vmem>>, vector<1x64x16xf32>
    %149 = vector.shape_cast %148 : vector<1x64x16xf32> to vector<64x16xf32>
    %cst_108 = arith.constant dense<0.000000e+00> : vector<8x16xf32>
    %150 = tpu.matmul %147, %149, %cst_108 {dimension_numbers = #tpu.dot_dimension_numbers<[1], [0], [0], [1], [0, 0, 1, 1], [], []>} : vector<8x64xf32>, vector<64x16xf32>, vector<8x16xf32> -> vector<8x16xf32>
    %c4_109 = arith.constant 4 : index
    %c0_110 = arith.constant 0 : index
    %c0_111 = arith.constant 0 : index
    %151 = vector.load %arg7[%c4_109, %c0_110, %c0_111] : memref<6x1x16xf32, #tpu.memory_space<vmem>>, vector<1x1x16xf32>
    %152 = vector.shape_cast %151 : vector<1x1x16xf32> to vector<1x16xf32>
    %153 = vector.broadcast %152 : vector<1x16xf32> to vector<8x16xf32>
    %154 = arith.addf %150, %153 : vector<8x16xf32>
    %155 = vector.extract_strided_slice %154 {offsets = [0, 0], sizes = [8, 8], strides = [1, 1]} : vector<8x16xf32> to vector<8x8xf32>
    %156 = math.tanh %155 : vector<8x8xf32>
    %157 = vector.extract_strided_slice %154 {offsets = [0, 8], sizes = [8, 8], strides = [1, 1]} : vector<8x16xf32> to vector<8x8xf32>
    %158 = math.exp %156 : vector<8x8xf32>
    %159 = arith.mulf %128, %158 : vector<8x8xf32>
    %160 = arith.addf %159, %157 : vector<8x8xf32>
    %161 = arith.addf %129, %156 : vector<8x8xf32>
    %c5 = arith.constant 5 : index
    %c0_112 = arith.constant 0 : index
    %c0_113 = arith.constant 0 : index
    %162 = vector.load %arg2[%c5, %c0_112, %c0_113] : memref<6x8x64xf32, #tpu.memory_space<vmem>>, vector<1x8x64xf32>
    %163 = vector.shape_cast %162 : vector<1x8x64xf32> to vector<8x64xf32>
    %cst_114 = arith.constant dense<0.000000e+00> : vector<8x64xf32>
    %164 = tpu.matmul %160, %163, %cst_114 {dimension_numbers = #tpu.dot_dimension_numbers<[1], [0], [0], [1], [0, 0, 1, 1], [], []>} : vector<8x8xf32>, vector<8x64xf32>, vector<8x64xf32> -> vector<8x64xf32>
    %c5_115 = arith.constant 5 : index
    %c0_116 = arith.constant 0 : index
    %c0_117 = arith.constant 0 : index
    %165 = vector.load %arg3[%c5_115, %c0_116, %c0_117] : memref<6x1x64xf32, #tpu.memory_space<vmem>>, vector<1x1x64xf32>
    %166 = vector.shape_cast %165 : vector<1x1x64xf32> to vector<1x64xf32>
    %167 = vector.broadcast %166 : vector<1x64xf32> to vector<8x64xf32>
    %168 = arith.addf %164, %167 : vector<8x64xf32>
    %cst_118 = arith.constant 0.000000e+00 : f32
    %169 = vector.broadcast %cst_118 : f32 to vector<8x64xf32>
    %170 = arith.maximumf %168, %169 : vector<8x64xf32>
    %c5_119 = arith.constant 5 : index
    %c0_120 = arith.constant 0 : index
    %c0_121 = arith.constant 0 : index
    %171 = vector.load %arg4[%c5_119, %c0_120, %c0_121] : memref<6x64x64xf32, #tpu.memory_space<vmem>>, vector<1x64x64xf32>
    %172 = vector.shape_cast %171 : vector<1x64x64xf32> to vector<64x64xf32>
    %cst_122 = arith.constant dense<0.000000e+00> : vector<8x64xf32>
    %173 = tpu.matmul %170, %172, %cst_122 {dimension_numbers = #tpu.dot_dimension_numbers<[1], [0], [0], [1], [0, 0, 1, 1], [], []>} : vector<8x64xf32>, vector<64x64xf32>, vector<8x64xf32> -> vector<8x64xf32>
    %c5_123 = arith.constant 5 : index
    %c0_124 = arith.constant 0 : index
    %c0_125 = arith.constant 0 : index
    %174 = vector.load %arg5[%c5_123, %c0_124, %c0_125] : memref<6x1x64xf32, #tpu.memory_space<vmem>>, vector<1x1x64xf32>
    %175 = vector.shape_cast %174 : vector<1x1x64xf32> to vector<1x64xf32>
    %176 = vector.broadcast %175 : vector<1x64xf32> to vector<8x64xf32>
    %177 = arith.addf %173, %176 : vector<8x64xf32>
    %cst_126 = arith.constant 0.000000e+00 : f32
    %178 = vector.broadcast %cst_126 : f32 to vector<8x64xf32>
    %179 = arith.maximumf %177, %178 : vector<8x64xf32>
    %c5_127 = arith.constant 5 : index
    %c0_128 = arith.constant 0 : index
    %c0_129 = arith.constant 0 : index
    %180 = vector.load %arg6[%c5_127, %c0_128, %c0_129] : memref<6x64x16xf32, #tpu.memory_space<vmem>>, vector<1x64x16xf32>
    %181 = vector.shape_cast %180 : vector<1x64x16xf32> to vector<64x16xf32>
    %cst_130 = arith.constant dense<0.000000e+00> : vector<8x16xf32>
    %182 = tpu.matmul %179, %181, %cst_130 {dimension_numbers = #tpu.dot_dimension_numbers<[1], [0], [0], [1], [0, 0, 1, 1], [], []>} : vector<8x64xf32>, vector<64x16xf32>, vector<8x16xf32> -> vector<8x16xf32>
    %c5_131 = arith.constant 5 : index
    %c0_132 = arith.constant 0 : index
    %c0_133 = arith.constant 0 : index
    %183 = vector.load %arg7[%c5_131, %c0_132, %c0_133] : memref<6x1x16xf32, #tpu.memory_space<vmem>>, vector<1x1x16xf32>
    %184 = vector.shape_cast %183 : vector<1x1x16xf32> to vector<1x16xf32>
    %185 = vector.broadcast %184 : vector<1x16xf32> to vector<8x16xf32>
    %186 = arith.addf %182, %185 : vector<8x16xf32>
    %187 = vector.extract_strided_slice %186 {offsets = [0, 0], sizes = [8, 8], strides = [1, 1]} : vector<8x16xf32> to vector<8x8xf32>
    %188 = math.tanh %187 : vector<8x8xf32>
    %189 = vector.extract_strided_slice %186 {offsets = [0, 8], sizes = [8, 8], strides = [1, 1]} : vector<8x16xf32> to vector<8x8xf32>
    %190 = math.exp %188 : vector<8x8xf32>
    %191 = arith.mulf %160, %190 : vector<8x8xf32>
    %192 = arith.addf %191, %189 : vector<8x8xf32>
    %193 = arith.addf %161, %188 : vector<8x8xf32>
    %c0_134 = arith.constant 0 : index
    %c0_135 = arith.constant 0 : index
    %194 = vector.load %arg8[%c0_134, %c0_135] : memref<8x8xf32, #tpu.memory_space<vmem>>, vector<8x8xf32>
    tpu.vector_store %arg8[%c0_134, %c0_135], %192 {strides = array<i32>} : memref<8x8xf32, #tpu.memory_space<vmem>>, vector<8x8xf32>,
    %cst_136 = arith.constant dense<0.000000e+00> : vector<8xf32>
    %195 = vector.multi_reduction <add>, %193, %cst_136 [1] : vector<8x8xf32> to vector<8xf32>
    %196 = vector.shape_cast %195 : vector<8xf32> to vector<8x1xf32>
    %c0_137 = arith.constant 0 : index
    %c0_138 = arith.constant 0 : index
    %197 = vector.load %arg9[%c0_137, %c0_138] : memref<8x1xf32, #tpu.memory_space<vmem>>, vector<8x1xf32>
    tpu.vector_store %arg9[%c0_137, %c0_138], %196 {strides = array<i32>} : memref<8x1xf32, #tpu.memory_space<vmem>>, vector<8x1xf32>,
    return
  }
  func.func @transform_0(%arg0: i32) -> (i32, i32) {
    %c0_i32 = arith.constant 0 : i32
    %c0_i32_0 = arith.constant 0 : i32
    return %arg0, %c0_i32 : i32, i32
  }
  func.func @transform_1(%arg0: i32) -> (i32, i32, i32) {
    %c0_i32 = arith.constant 0 : i32
    %c0_i32_0 = arith.constant 0 : i32
    %c0_i32_1 = arith.constant 0 : i32
    %c0_i32_2 = arith.constant 0 : i32
    return %c0_i32, %c0_i32_0, %c0_i32_1 : i32, i32, i32
  }
  func.func @transform_2(%arg0: i32) -> (i32, i32, i32) {
    %c0_i32 = arith.constant 0 : i32
    %c0_i32_0 = arith.constant 0 : i32
    %c0_i32_1 = arith.constant 0 : i32
    %c0_i32_2 = arith.constant 0 : i32
    return %c0_i32, %c0_i32_0, %c0_i32_1 : i32, i32, i32
  }
  func.func @transform_3(%arg0: i32) -> (i32, i32, i32) {
    %c0_i32 = arith.constant 0 : i32
    %c0_i32_0 = arith.constant 0 : i32
    %c0_i32_1 = arith.constant 0 : i32
    %c0_i32_2 = arith.constant 0 : i32
    return %c0_i32, %c0_i32_0, %c0_i32_1 : i32, i32, i32
  }
  func.func @transform_4(%arg0: i32) -> (i32, i32, i32) {
    %c0_i32 = arith.constant 0 : i32
    %c0_i32_0 = arith.constant 0 : i32
    %c0_i32_1 = arith.constant 0 : i32
    %c0_i32_2 = arith.constant 0 : i32
    return %c0_i32, %c0_i32_0, %c0_i32_1 : i32, i32, i32
  }
  func.func @transform_5(%arg0: i32) -> (i32, i32, i32) {
    %c0_i32 = arith.constant 0 : i32
    %c0_i32_0 = arith.constant 0 : i32
    %c0_i32_1 = arith.constant 0 : i32
    %c0_i32_2 = arith.constant 0 : i32
    return %c0_i32, %c0_i32_0, %c0_i32_1 : i32, i32, i32
  }
  func.func @transform_6(%arg0: i32) -> (i32, i32, i32) {
    %c0_i32 = arith.constant 0 : i32
    %c0_i32_0 = arith.constant 0 : i32
    %c0_i32_1 = arith.constant 0 : i32
    %c0_i32_2 = arith.constant 0 : i32
    return %c0_i32, %c0_i32_0, %c0_i32_1 : i32, i32, i32
  }
  func.func @transform_7(%arg0: i32) -> (i32, i32) {
    %c0_i32 = arith.constant 0 : i32
    %c0_i32_0 = arith.constant 0 : i32
    return %arg0, %c0_i32 : i32, i32
  }
  func.func @transform_8(%arg0: i32) -> (i32, i32) {
    %c0_i32 = arith.constant 0 : i32
    %c0_i32_0 = arith.constant 0 : i32
    return %arg0, %c0_i32 : i32, i32
  }
}

</mosaic_0001>

<llo_original>
// kernel: flow_forward.1
$region0: #{flow_forward.1}
  #allocation0 [shape = 'u32[]', space=smem, size = 0x4, offset = 0x4, fixed_abs, tag = 'smem constant byte address 0x4 - core index']
  #allocation1 [shape = 'u32[144,128]{1,0:T(1,128)}', space=vmem, size = 0x12000, scoped, tag = 'internal scratch']
  %s0 = inlined_call_operand.vmem [shape: f32[8,8], index: 0, kind: input, shape index: {}]
  %s1 = inlined_call_operand.vmem [shape: f32[6,8,64], index: 1, kind: input, shape index: {}]
  %s2 = inlined_call_operand.vmem [shape: f32[6,1,64], index: 2, kind: input, shape index: {}]
  %s3 = inlined_call_operand.vmem [shape: f32[6,64,64], index: 3, kind: input, shape index: {}]
  %s4 = inlined_call_operand.vmem [shape: f32[6,1,64], index: 4, kind: input, shape index: {}]
  %s5 = inlined_call_operand.vmem [shape: f32[6,64,16], index: 5, kind: input, shape index: {}]
  %s6 = inlined_call_operand.vmem [shape: f32[6,1,16], index: 6, kind: input, shape index: {}]
  %s7 = inlined_call_operand.vmem [shape: f32[8,8], index: 7, kind: output, shape index: {0}]
  %s8 = inlined_call_operand.vmem [shape: f32[8,1], index: 8, kind: output, shape index: {1}]
  %9 = xla_tuple %s7, %s8
  %s10 = sld [smem:[#allocation0]]
  $region46: #{flow_forward.1} parent=0
    _
  %s12 = ssub.s32 1, %s10
  %s13 = scalar_select 0, %s12, %s10
  // Predicated region
  $region2: #{flow_forward.1} parent=0 // pred_check
    _
  $region3: #{flow_forward.1} parent=0 // pred_check_branch
    %15 = sbr.rel (0) target = $region5
  $region4: #{flow_forward.1} parent=0 // pred_region
    _
  $region5: #{flow_forward.1} parent=0 // pred_fallthru
    _
  // Predicated region
  $region6: #{flow_forward.1} parent=0 // pred_check
    _
  $region7: #{flow_forward.1} parent=0 // pred_check_branch
    %17 = sbr.rel (0) target = $region9
  $region8: #{flow_forward.1} parent=0 // pred_region
    _
  $region9: #{flow_forward.1} parent=0 // pred_fallthru
    _
  // Predicated region
  $region10: #{flow_forward.1} parent=0 // pred_check
    _
  $region11: #{flow_forward.1} parent=0 // pred_check_branch
    %19 = sbr.rel (0) target = $region13
  $region12: #{flow_forward.1} parent=0 // pred_region
    _
  $region13: #{flow_forward.1} parent=0 // pred_fallthru
    _
  // Predicated region
  $region14: #{flow_forward.1} parent=0 // pred_check
    _
  $region15: #{flow_forward.1} parent=0 // pred_check_branch
    %21 = sbr.rel (0) target = $region17
  $region16: #{flow_forward.1} parent=0 // pred_region
    _
  $region17: #{flow_forward.1} parent=0 // pred_fallthru
    _
  // Predicated region
  $region18: #{flow_forward.1} parent=0 // pred_check
    _
  $region19: #{flow_forward.1} parent=0 // pred_check_branch
    %23 = sbr.rel (0) target = $region21
  $region20: #{flow_forward.1} parent=0 // pred_region
    _
  $region21: #{flow_forward.1} parent=0 // pred_fallthru
    _
  // Predicated region
  $region22: #{flow_forward.1} parent=0 // pred_check
    _
  $region23: #{flow_forward.1} parent=0 // pred_check_branch
    %25 = sbr.rel (0) target = $region25
  $region24: #{flow_forward.1} parent=0 // pred_region
    _
  $region25: #{flow_forward.1} parent=0 // pred_fallthru
    _
  // Predicated region
  $region26: #{flow_forward.1} parent=0 // pred_check
    _
  $region27: #{flow_forward.1} parent=0 // pred_check_branch
    %27 = sbr.rel (0) target = $region29
  $region28: #{flow_forward.1} parent=0 // pred_region
    _
  $region29: #{flow_forward.1} parent=0 // pred_fallthru
    _
  %v28 = vld [vmem:[%s0] sm:$0xff]
  %v29 = vld [vmem:[%s1] sm:$0xff]
  %v30 = vld [vmem:[%s2] sm:$0x1]
  %v32 = vlaneseq
  %v33 = vshrl.u32 %v32, 7
  %v34 = vsub.s32 0, %v33
  %v35 = vrot.slane %v30, %v34
  %vm37 = vcmask 64512
  %v39 = vsel %vm37, %v28, 0
  %41 = vmatprep.subr.mxu0 0.0
  %42 = vmatpush1.msra.mxu0 0.0
  %43 = vmatprep.subr.mxu0 0.0
  %44 = vmatpush1.msra.mxu0 0.0
  %45 = vmatprep.subr.mxu0 0.0
  %46 = vmatpush1.msra.mxu0 0.0
  %47 = vmatprep.subr.mxu0 0.0
  %48 = vmatpush1.msra.mxu0 0.0
  %49 = vmatprep.subr.mxu0 0.0
  %50 = vmatpush1.msra.mxu0 0.0
  %51 = vmatprep.subr.mxu0 0.0
  %52 = vmatpush1.msra.mxu0 0.0
  %53 = vmatprep.subr.mxu0 0.0
  %54 = vmatpush1.msra.mxu0 0.0
  %55 = vmatprep.subr.mxu0 0.0
  %56 = vmatpush1.msra.mxu0 0.0
  %57 = vmatprep.subr.mxu0 0.0
  %58 = vmatpush1.msra.mxu0 0.0
  %59 = vmatprep.subr.mxu0 0.0
  %60 = vmatpush1.msra.mxu0 0.0
  %61 = vmatprep.subr.mxu0 0.0
  %62 = vmatpush1.msra.mxu0 0.0
  %63 = vmatprep.subr.mxu0 0.0
  %64 = vmatpush1.msra.mxu0 0.0
  %65 = vmatprep.subr.mxu0 0.0
  %66 = vmatpush1.msra.mxu0 0.0
  %67 = vmatprep.subr.mxu0 0.0
  %68 = vmatpush1.msra.mxu0 0.0
  %69 = vmatprep.subr.mxu0 0.0
  %70 = vmatpush1.msra.mxu0 0.0
  %71 = vmatprep.subr.mxu0 0.0
  %72 = vmatpush1.msra.mxu0 %v29
  %73 = vmatprep.subr.mxu0 0.0
  %74 = vmatpush2.msra.mxu0 0.0
  %75 = vmatprep.subr.mxu0 0.0
  %76 = vmatpush2.msra.mxu0 0.0
  %77 = vmatprep.subr.mxu0 0.0
  %78 = vmatpush2.msra.mxu0 0.0
  %79 = vmatprep.subr.mxu0 0.0
  %80 = vmatpush2.msra.mxu0 0.0
  %81 = vmatprep.subr.mxu0 0.0
  %82 = vmatpush2.msra.mxu0 0.0
  %83 = vmatprep.subr.mxu0 0.0
  %84 = vmatpush2.msra.mxu0 0.0
  %85 = vmatprep.subr.mxu0 0.0
  %86 = vmatpush2.msra.mxu0 0.0
  %87 = vmatprep.subr.mxu0 0.0
  %88 = vmatpush2.msra.mxu0 0.0
  %89 = vmatprep.subr.mxu0 0.0
  %90 = vmatpush2.msra.mxu0 0.0
  %91 = vmatprep.subr.mxu0 0.0
  %92 = vmatpush2.msra.mxu0 0.0
  %93 = vmatprep.subr.mxu0 0.0
  %94 = vmatpush2.msra.mxu0 0.0
  %95 = vmatprep.subr.mxu0 0.0
  %96 = vmatpush2.msra.mxu0 0.0
  %97 = vmatprep.subr.mxu0 0.0
  %98 = vmatpush2.msra.mxu0 0.0
  %99 = vmatprep.subr.mxu0 0.0
  %100 = vmatpush2.msra.mxu0 0.0
  %101 = vmatprep.subr.mxu0 0.0
  %102 = vmatpush2.msra.mxu0 0.0
  %103 = vmatprep.subr.mxu0 0.0
  %104 = vmatpush2.msra.mxu0 0.0
  %105 = vmatprep.mubr.f32.mxu0 0.0
  %106 = vmatmul.mubr.f32.gmra.mxu0 %v39
  %v107 = vpop.f32.mrf.mxu0
  %v108 = vadd.f32 %v35, %v107
  %v109 = vpop.f32.mrf.mxu0
  %110 = vdwg.mxu0
  %v111 = vmax.f32 %v108, 0.0
  %v112 = vld [vmem:[%s3] sm:$0xff]
  %v113 = vld [vmem:[%s3 + $0x8] sm:$0xff]
  %v114 = vld [vmem:[%s3 + $0x10] sm:$0xff]
  %v115 = vld [vmem:[%s3 + $0x18] sm:$0xff]
  %v116 = vld [vmem:[%s3 + $0x20] sm:$0xff]
  %v117 = vld [vmem:[%s3 + $0x28] sm:$0xff]
  %v118 = vld [vmem:[%s3 + $0x30] sm:$0xff]
  %v119 = vld [vmem:[%s3 + $0x38] sm:$0xff]
  %v120 = vld [vmem:[%s4] sm:$0x1]
  %v122 = vlaneseq
  %v123 = vshrl.u32 %v122, 7
  %v124 = vsub.s32 0, %v123
  %v125 = vrot.slane %v120, %v124
  %vm127 = vcmask 523264
  %v129 = vsel %vm127, %v111, 0
  %131 = vmatprep.subr.mxu0 0.0
  %132 = vmatpush1.msra.mxu0 0.0
  %133 = vmatprep.subr.mxu0 0.0
  %134 = vmatpush1.msra.mxu0 0.0
  %135 = vmatprep.subr.mxu0 0.0
  %136 = vmatpush1.msra.mxu0 0.0
  %137 = vmatprep.subr.mxu0 0.0
  %138 = vmatpush1.msra.mxu0 0.0
  %139 = vmatprep.subr.mxu0 0.0
  %140 = vmatpush1.msra.mxu0 0.0
  %141 = vmatprep.subr.mxu0 0.0
  %142 = vmatpush1.msra.mxu0 0.0
  %143 = vmatprep.subr.mxu0 0.0
  %144 = vmatpush1.msra.mxu0 0.0
  %145 = vmatprep.subr.mxu0 0.0
  %146 = vmatpush1.msra.mxu0 0.0
  %147 = vmatprep.subr.mxu0 0.0
  %148 = vmatpush1.msra.mxu0 %v119
  %149 = vmatprep.subr.mxu0 0.0
  %150 = vmatpush1.msra.mxu0 %v118
  %151 = vmatprep.subr.mxu0 0.0
  %152 = vmatpush1.msra.mxu0 %v117
  %153 = vmatprep.subr.mxu0 0.0
  %154 = vmatpush1.msra.mxu0 %v116
  %155 = vmatprep.subr.mxu0 0.0
  %156 = vmatpush1.msra.mxu0 %v115
  %157 = vmatprep.subr.mxu0 0.0
  %158 = vmatpush1.msra.mxu0 %v114
  %159 = vmatprep.subr.mxu0 0.0
  %160 = vmatpush1.msra.mxu0 %v113
  %161 = vmatprep.subr.mxu0 0.0
  %162 = vmatpush1.msra.mxu0 %v112
  %163 = vmatprep.subr.mxu0 0.0
  %164 = vmatpush2.msra.mxu0 0.0
  %165 = vmatprep.subr.mxu0 0.0
  %166 = vmatpush2.msra.mxu0 0.0
  %167 = vmatprep.subr.mxu0 0.0
  %168 = vmatpush2.msra.mxu0 0.0
  %169 = vmatprep.subr.mxu0 0.0
  %170 = vmatpush2.msra.mxu0 0.0
  %171 = vmatprep.subr.mxu0 0.0
  %172 = vmatpush2.msra.mxu0 0.0
  %173 = vmatprep.subr.mxu0 0.0
  %174 = vmatpush2.msra.mxu0 0.0
  %175 = vmatprep.subr.mxu0 0.0
  %176 = vmatpush2.msra.mxu0 0.0
  %177 = vmatprep.subr.mxu0 0.0
  %178 = vmatpush2.msra.mxu0 0.0
  %179 = vmatprep.subr.mxu0 0.0
  %180 = vmatpush2.msra.mxu0 0.0
  %181 = vmatprep.subr.mxu0 0.0
  %182 = vmatpush2.msra.mxu0 0.0
  %183 = vmatprep.subr.mxu0 0.0
  %184 = vmatpush2.msra.mxu0 0.0
  %185 = vmatprep.subr.mxu0 0.0
  %186 = vmatpush2.msra.mxu0 0.0
  %187 = vmatprep.subr.mxu0 0.0
  %188 = vmatpush2.msra.mxu0 0.0
  %189 = vmatprep.subr.mxu0 0.0
  %190 = vmatpush2.msra.mxu0 0.0
  %191 = vmatprep.subr.mxu0 0.0
  %192 = vmatpush2.msra.mxu0 0.0
  %193 = vmatprep.subr.mxu0 0.0
  %194 = vmatpush2.msra.mxu0 0.0
  %195 = vmatprep.mubr.f32.mxu0 0.0
  %196 = vmatmul.mubr.f32.gmra.mxu0 %v129
  %v197 = vpop.f32.mrf.mxu0
  %v198 = vadd.f32 %v125, %v197
  %v199 = vpop.f32.mrf.mxu0
  %200 = vdwg.mxu0
  %v201 = vmax.f32 %v198, 0.0
  %v202 = vld [vmem:[%s5] sm:$0xff]
  %v203 = vld [vmem:[%s5 + $0x8] sm:$0xff]
  %v204 = vld [vmem:[%s5 + $0x10] sm:$0xff]
  %v205 = vld [vmem:[%s5 + $0x18] sm:$0xff]
  %v206 = vld [vmem:[%s5 + $0x20] sm:$0xff]
  %v207 = vld [vmem:[%s5 + $0x28] sm:$0xff]
  %v208 = vld [vmem:[%s5 + $0x30] sm:$0xff]
  %v209 = vld [vmem:[%s5 + $0x38] sm:$0xff]
  %v210 = vld [vmem:[%s6] sm:$0x1]
  %v212 = vlaneseq
  %v213 = vshrl.u32 %v212, 7
  %v214 = vsub.s32 0, %v213
  %v215 = vrot.slane %v210, %v214
  %v218 = vsel %vm127, %v201, 0
  %220 = vmatprep.subr.mxu0 0.0
  %221 = vmatpush1.msra.mxu0 0.0
  %222 = vmatprep.subr.mxu0 0.0
  %223 = vmatpush1.msra.mxu0 0.0
  %224 = vmatprep.subr.mxu0 0.0
  %225 = vmatpush1.msra.mxu0 0.0
  %226 = vmatprep.subr.mxu0 0.0
  %227 = vmatpush1.msra.mxu0 0.0
  %228 = vmatprep.subr.mxu0 0.0
  %229 = vmatpush1.msra.mxu0 0.0
  %230 = vmatprep.subr.mxu0 0.0
  %231 = vmatpush1.msra.mxu0 0.0
  %232 = vmatprep.subr.mxu0 0.0
  %233 = vmatpush1.msra.mxu0 0.0
  %234 = vmatprep.subr.mxu0 0.0
  %235 = vmatpush1.msra.mxu0 0.0
  %236 = vmatprep.subr.mxu0 0.0
  %237 = vmatpush1.msra.mxu0 %v209
  %238 = vmatprep.subr.mxu0 0.0
  %239 = vmatpush1.msra.mxu0 %v208
  %240 = vmatprep.subr.mxu0 0.0
  %241 = vmatpush1.msra.mxu0 %v207
  %242 = vmatprep.subr.mxu0 0.0
  %243 = vmatpush1.msra.mxu0 %v206
  %244 = vmatprep.subr.mxu0 0.0
  %245 = vmatpush1.msra.mxu0 %v205
  %246 = vmatprep.subr.mxu0 0.0
  %247 = vmatpush1.msra.mxu0 %v204
  %248 = vmatprep.subr.mxu0 0.0
  %249 = vmatpush1.msra.mxu0 %v203
  %250 = vmatprep.subr.mxu0 0.0
  %251 = vmatpush1.msra.mxu0 %v202
  %252 = vmatprep.subr.mxu0 0.0
  %253 = vmatpush2.msra.mxu0 0.0
  %254 = vmatprep.subr.mxu0 0.0
  %255 = vmatpush2.msra.mxu0 0.0
  %256 = vmatprep.subr.mxu0 0.0
  %257 = vmatpush2.msra.mxu0 0.0
  %258 = vmatprep.subr.mxu0 0.0
  %259 = vmatpush2.msra.mxu0 0.0
  %260 = vmatprep.subr.mxu0 0.0
  %261 = vmatpush2.msra.mxu0 0.0
  %262 = vmatprep.subr.mxu0 0.0
  %263 = vmatpush2.msra.mxu0 0.0
  %264 = vmatprep.subr.mxu0 0.0
  %265 = vmatpush2.msra.mxu0 0.0
  %266 = vmatprep.subr.mxu0 0.0
  %267 = vmatpush2.msra.mxu0 0.0
  %268 = vmatprep.subr.mxu0 0.0
  %269 = vmatpush2.msra.mxu0 0.0
  %270 = vmatprep.subr.mxu0 0.0
  %271 = vmatpush2.msra.mxu0 0.0
  %272 = vmatprep.subr.mxu0 0.0
  %273 = vmatpush2.msra.mxu0 0.0
  %274 = vmatprep.subr.mxu0 0.0
  %275 = vmatpush2.msra.mxu0 0.0
  %276 = vmatprep.subr.mxu0 0.0
  %277 = vmatpush2.msra.mxu0 0.0
  %278 = vmatprep.subr.mxu0 0.0
  %279 = vmatpush2.msra.mxu0 0.0
  %280 = vmatprep.subr.mxu0 0.0
  %281 = vmatpush2.msra.mxu0 0.0
  %282 = vmatprep.subr.mxu0 0.0
  %283 = vmatpush2.msra.mxu0 0.0
  %284 = vmatprep.mubr.f32.mxu0 0.0
  %285 = vmatmul.mubr.f32.gmra.mxu0 %v218
  %v286 = vpop.f32.mrf.mxu0
  %v287 = vadd.f32 %v215, %v286
  %v288 = vpop.f32.mrf.mxu0
  %289 = vdwg.mxu0
  %v290 = vtanh.pop %v287
  %v291 = vmul.f32 %v290, 1.442695
  %v292 = vpow.pop %v291
  %v293 = vmul.f32 %v28, %v292
  %295 = vrot.lane.b32.xlu0 %v287, 120
  %v296 = vpop.permute.xlu0 %295
  %v298 = vadd.f32 %v293, %v296
  %v299 = vadd.f32 %v290, 0.0
  %s300 = scalar_lea.vmem %s1, 8
  %v301 = vld [vmem:[%s300] sm:$0xff]
  %s302 = scalar_lea.vmem %s2, 1
  %v303 = vld [vmem:[%s302] sm:$0x1]
  %v305 = vlaneseq
  %v306 = vshrl.u32 %v305, 7
  %v307 = vsub.s32 0, %v306
  %v308 = vrot.slane %v303, %v307
  %v311 = vsel %vm37, %v298, 0
  %313 = vmatprep.subr.mxu0 0.0
  %314 = vmatpush1.msra.mxu0 0.0
  %315 = vmatprep.subr.mxu0 0.0
  %316 = vmatpush1.msra.mxu0 0.0
  %317 = vmatprep.subr.mxu0 0.0
  %318 = vmatpush1.msra.mxu0 0.0
  %319 = vmatprep.subr.mxu0 0.0
  %320 = vmatpush1.msra.mxu0 0.0
  %321 = vmatprep.subr.mxu0 0.0
  %322 = vmatpush1.msra.mxu0 0.0
  %323 = vmatprep.subr.mxu0 0.0
  %324 = vmatpush1.msra.mxu0 0.0
  %325 = vmatprep.subr.mxu0 0.0
  %326 = vmatpush1.msra.mxu0 0.0
  %327 = vmatprep.subr.mxu0 0.0
  %328 = vmatpush1.msra.mxu0 0.0
  %329 = vmatprep.subr.mxu0 0.0
  %330 = vmatpush1.msra.mxu0 0.0
  %331 = vmatprep.subr.mxu0 0.0
  %332 = vmatpush1.msra.mxu0 0.0
  %333 = vmatprep.subr.mxu0 0.0
  %334 = vmatpush1.msra.mxu0 0.0
  %335 = vmatprep.subr.mxu0 0.0
  %336 = vmatpush1.msra.mxu0 0.0
  %337 = vmatprep.subr.mxu0 0.0
  %338 = vmatpush1.msra.mxu0 0.0
  %339 = vmatprep.subr.mxu0 0.0
  %340 = vmatpush1.msra.mxu0 0.0
  %341 = vmatprep.subr.mxu0 0.0
  %342 = vmatpush1.msra.mxu0 0.0
  %343 = vmatprep.subr.mxu0 0.0
  %344 = vmatpush1.msra.mxu0 %v301
  %345 = vmatprep.subr.mxu0 0.0
  %346 = vmatpush2.msra.mxu0 0.0
  %347 = vmatprep.subr.mxu0 0.0
  %348 = vmatpush2.msra.mxu0 0.0
  %349 = vmatprep.subr.mxu0 0.0
  %350 = vmatpush2.msra.mxu0 0.0
  %351 = vmatprep.subr.mxu0 0.0
  %352 = vmatpush2.msra.mxu0 0.0
  %353 = vmatprep.subr.mxu0 0.0
  %354 = vmatpush2.msra.mxu0 0.0
  %355 = vmatprep.subr.mxu0 0.0
  %356 = vmatpush2.msra.mxu0 0.0
  %357 = vmatprep.subr.mxu0 0.0
  %358 = vmatpush2.msra.mxu0 0.0
  %359 = vmatprep.subr.mxu0 0.0
  %360 = vmatpush2.msra.mxu0 0.0
  %361 = vmatprep.subr.mxu0 0.0
  %362 = vmatpush2.msra.mxu0 0.0
  %363 = vmatprep.subr.mxu0 0.0
  %364 = vmatpush2.msra.mxu0 0.0
  %365 = vmatprep.subr.mxu0 0.0
  %366 = vmatpush2.msra.mxu0 0.0
  %367 = vmatprep.subr.mxu0 0.0
  %368 = vmatpush2.msra.mxu0 0.0
  %369 = vmatprep.subr.mxu0 0.0
  %370 = vmatpush2.msra.mxu0 0.0
  %371 = vmatprep.subr.mxu0 0.0
  %372 = vmatpush2.msra.mxu0 0.0
  %373 = vmatprep.subr.mxu0 0.0
  %374 = vmatpush2.msra.mxu0 0.0
  %375 = vmatprep.subr.mxu0 0.0
  %376 = vmatpush2.msra.mxu0 0.0
  %377 = vmatprep.mubr.f32.mxu0 0.0
  %378 = vmatmul.mubr.f32.gmra.mxu0 %v311
  %v379 = vpop.f32.mrf.mxu0
  %v380 = vadd.f32 %v308, %v379
  %v381 = vpop.f32.mrf.mxu0
  %382 = vdwg.mxu0
  %v383 = vmax.f32 %v380, 0.0
  %s384 = scalar_lea.vmem %s3, 64
  %v385 = vld [vmem:[%s384] sm:$0xff]
  %v386 = vld [vmem:[%s384 + $0x8] sm:$0xff]
  %v387 = vld [vmem:[%s384 + $0x10] sm:$0xff]
  %v388 = vld [vmem:[%s384 + $0x18] sm:$0xff]
  %v389 = vld [vmem:[%s384 + $0x20] sm:$0xff]
  %v390 = vld [vmem:[%s384 + $0x28] sm:$0xff]
  %v391 = vld [vmem:[%s384 + $0x30] sm:$0xff]
  %v392 = vld [vmem:[%s384 + $0x38] sm:$0xff]
  %s393 = scalar_lea.vmem %s4, 1
  %v394 = vld [vmem:[%s393] sm:$0x1]
  %v396 = vlaneseq
  %v397 = vshrl.u32 %v396, 7
  %v398 = vsub.s32 0, %v397
  %v399 = vrot.slane %v394, %v398
  %v402 = vsel %vm127, %v383, 0
  %404 = vmatprep.subr.mxu0 0.0
  %405 = vmatpush1.msra.mxu0 0.0
  %406 = vmatprep.subr.mxu0 0.0
  %407 = vmatpush1.msra.mxu0 0.0
  %408 = vmatprep.subr.mxu0 0.0
  %409 = vmatpush1.msra.mxu0 0.0
  %410 = vmatprep.subr.mxu0 0.0
  %411 = vmatpush1.msra.mxu0 0.0
  %412 = vmatprep.subr.mxu0 0.0
  %413 = vmatpush1.msra.mxu0 0.0
  %414 = vmatprep.subr.mxu0 0.0
  %415 = vmatpush1.msra.mxu0 0.0
  %416 = vmatprep.subr.mxu0 0.0
  %417 = vmatpush1.msra.mxu0 0.0
  %418 = vmatprep.subr.mxu0 0.0
  %419 = vmatpush1.msra.mxu0 0.0
  %420 = vmatprep.subr.mxu0 0.0
  %421 = vmatpush1.msra.mxu0 %v392
  %422 = vmatprep.subr.mxu0 0.0
  %423 = vmatpush1.msra.mxu0 %v391
  %424 = vmatprep.subr.mxu0 0.0
  %425 = vmatpush1.msra.mxu0 %v390
  %426 = vmatprep.subr.mxu0 0.0
  %427 = vmatpush1.msra.mxu0 %v389
  %428 = vmatprep.subr.mxu0 0.0
  %429 = vmatpush1.msra.mxu0 %v388
  %430 = vmatprep.subr.mxu0 0.0
  %431 = vmatpush1.msra.mxu0 %v387
  %432 = vmatprep.subr.mxu0 0.0
  %433 = vmatpush1.msra.mxu0 %v386
  %434 = vmatprep.subr.mxu0 0.0
  %435 = vmatpush1.msra.mxu0 %v385
  %436 = vmatprep.subr.mxu0 0.0
  %437 = vmatpush2.msra.mxu0 0.0
  %438 = vmatprep.subr.mxu0 0.0
  %439 = vmatpush2.msra.mxu0 0.0
  %440 = vmatprep.subr.mxu0 0.0
  %441 = vmatpush2.msra.mxu0 0.0
  %442 = vmatprep.subr.mxu0 0.0
  %443 = vmatpush2.msra.mxu0 0.0
  %444 = vmatprep.subr.mxu0 0.0
  %445 = vmatpush2.msra.mxu0 0.0
  %446 = vmatprep.subr.mxu0 0.0
  %447 = vmatpush2.msra.mxu0 0.0
  %448 = vmatprep.subr.mxu0 0.0
  %449 = vmatpush2.msra.mxu0 0.0
  %450 = vmatprep.subr.mxu0 0.0
  %451 = vmatpush2.msra.mxu0 0.0
  %452 = vmatprep.subr.mxu0 0.0
  %453 = vmatpush2.msra.mxu0 0.0
  %454 = vmatprep.subr.mxu0 0.0
  %455 = vmatpush2.msra.mxu0 0.0
  %456 = vmatprep.subr.mxu0 0.0
  %457 = vmatpush2.msra.mxu0 0.0
  %458 = vmatprep.subr.mxu0 0.0
  %459 = vmatpush2.msra.mxu0 0.0
  %460 = vmatprep.subr.mxu0 0.0
  %461 = vmatpush2.msra.mxu0 0.0
  %462 = vmatprep.subr.mxu0 0.0
  %463 = vmatpush2.msra.mxu0 0.0
  %464 = vmatprep.subr.mxu0 0.0
  %465 = vmatpush2.msra.mxu0 0.0
  %466 = vmatprep.subr.mxu0 0.0
  %467 = vmatpush2.msra.mxu0 0.0
  %468 = vmatprep.mubr.f32.mxu0 0.0
  %469 = vmatmul.mubr.f32.gmra.mxu0 %v402
  %v470 = vpop.f32.mrf.mxu0
  %v471 = vadd.f32 %v399, %v470
  %v472 = vpop.f32.mrf.mxu0
  %473 = vdwg.mxu0
  %v474 = vmax.f32 %v471, 0.0
  %s475 = scalar_lea.vmem %s5, 64
  %v476 = vld [vmem:[%s475] sm:$0xff]
  %v477 = vld [vmem:[%s475 + $0x8] sm:$0xff]
  %v478 = vld [vmem:[%s475 + $0x10] sm:$0xff]
  %v479 = vld [vmem:[%s475 + $0x18] sm:$0xff]
  %v480 = vld [vmem:[%s475 + $0x20] sm:$0xff]
  %v481 = vld [vmem:[%s475 + $0x28] sm:$0xff]
  %v482 = vld [vmem:[%s475 + $0x30] sm:$0xff]
  %v483 = vld [vmem:[%s475 + $0x38] sm:$0xff]
  %s484 = scalar_lea.vmem %s6, 1
  %v485 = vld [vmem:[%s484] sm:$0x1]
  %v487 = vlaneseq
  %v488 = vshrl.u32 %v487, 7
  %v489 = vsub.s32 0, %v488
  %v490 = vrot.slane %v485, %v489
  %v493 = vsel %vm127, %v474, 0
  %495 = vmatprep.subr.mxu0 0.0
  %496 = vmatpush1.msra.mxu0 0.0
  %497 = vmatprep.subr.mxu0 0.0
  %498 = vmatpush1.msra.mxu0 0.0
  %499 = vmatprep.subr.mxu0 0.0
  %500 = vmatpush1.msra.mxu0 0.0
  %501 = vmatprep.subr.mxu0 0.0
  %502 = vmatpush1.msra.mxu0 0.0
  %503 = vmatprep.subr.mxu0 0.0
  %504 = vmatpush1.msra.mxu0 0.0
  %505 = vmatprep.subr.mxu0 0.0
  %506 = vmatpush1.msra.mxu0 0.0
  %507 = vmatprep.subr.mxu0 0.0
  %508 = vmatpush1.msra.mxu0 0.0
  %509 = vmatprep.subr.mxu0 0.0
  %510 = vmatpush1.msra.mxu0 0.0
  %511 = vmatprep.subr.mxu0 0.0
  %512 = vmatpush1.msra.mxu0 %v483
  %513 = vmatprep.subr.mxu0 0.0
  %514 = vmatpush1.msra.mxu0 %v482
  %515 = vmatprep.subr.mxu0 0.0
  %516 = vmatpush1.msra.mxu0 %v481
  %517 = vmatprep.subr.mxu0 0.0
  %518 = vmatpush1.msra.mxu0 %v480
  %519 = vmatprep.subr.mxu0 0.0
  %520 = vmatpush1.msra.mxu0 %v479
  %521 = vmatprep.subr.mxu0 0.0
  %522 = vmatpush1.msra.mxu0 %v478
  %523 = vmatprep.subr.mxu0 0.0
  %524 = vmatpush1.msra.mxu0 %v477
  %525 = vmatprep.subr.mxu0 0.0
  %526 = vmatpush1.msra.mxu0 %v476
  %527 = vmatprep.subr.mxu0 0.0
  %528 = vmatpush2.msra.mxu0 0.0
  %529 = vmatprep.subr.mxu0 0.0
  %530 = vmatpush2.msra.mxu0 0.0
  %531 = vmatprep.subr.mxu0 0.0
  %532 = vmatpush2.msra.mxu0 0.0
  %533 = vmatprep.subr.mxu0 0.0
  %534 = vmatpush2.msra.mxu0 0.0
  %535 = vmatprep.subr.mxu0 0.0
  %536 = vmatpush2.msra.mxu0 0.0
  %537 = vmatprep.subr.mxu0 0.0
  %538 = vmatpush2.msra.mxu0 0.0
  %539 = vmatprep.subr.mxu0 0.0
  %540 = vmatpush2.msra.mxu0 0.0
  %541 = vmatprep.subr.mxu0 0.0
  %542 = vmatpush2.msra.mxu0 0.0
  %543 = vmatprep.subr.mxu0 0.0
  %544 = vmatpush2.msra.mxu0 0.0
  %545 = vmatprep.subr.mxu0 0.0
  %546 = vmatpush2.msra.mxu0 0.0
  %547 = vmatprep.subr.mxu0 0.0
  %548 = vmatpush2.msra.mxu0 0.0
  %549 = vmatprep.subr.mxu0 0.0
  %550 = vmatpush2.msra.mxu0 0.0
  %551 = vmatprep.subr.mxu0 0.0
  %552 = vmatpush2.msra.mxu0 0.0
  %553 = vmatprep.subr.mxu0 0.0
  %554 = vmatpush2.msra.mxu0 0.0
  %555 = vmatprep.subr.mxu0 0.0
  %556 = vmatpush2.msra.mxu0 0.0
  %557 = vmatprep.subr.mxu0 0.0
  %558 = vmatpush2.msra.mxu0 0.0
  %559 = vmatprep.mubr.f32.mxu0 0.0
  %560 = vmatmul.mubr.f32.gmra.mxu0 %v493
  %v561 = vpop.f32.mrf.mxu0
  %v562 = vadd.f32 %v490, %v561
  %v563 = vpop.f32.mrf.mxu0
  %564 = vdwg.mxu0
  %v565 = vtanh.pop %v562
  %v566 = vmul.f32 %v565, 1.442695
  %v567 = vpow.pop %v566
  %v568 = vmul.f32 %v298, %v567
  %570 = vrot.lane.b32.xlu0 %v562, 120
  %v571 = vpop.permute.xlu0 %570
  %v573 = vadd.f32 %v568, %v571
  %v574 = vadd.f32 %v299, %v565
  %s575 = scalar_lea.vmem %s1, 16
  %v576 = vld [vmem:[%s575] sm:$0xff]
  %s577 = scalar_lea.vmem %s2, 2
  %v578 = vld [vmem:[%s577] sm:$0x1]
  %v580 = vlaneseq
  %v581 = vshrl.u32 %v580, 7
  %v582 = vsub.s32 0, %v581
  %v583 = vrot.slane %v578, %v582
  %v586 = vsel %vm37, %v573, 0
  %588 = vmatprep.subr.mxu0 0.0
  %589 = vmatpush1.msra.mxu0 0.0
  %590 = vmatprep.subr.mxu0 0.0
  %591 = vmatpush1.msra.mxu0 0.0
  %592 = vmatprep.subr.mxu0 0.0
  %593 = vmatpush1.msra.mxu0 0.0
  %594 = vmatprep.subr.mxu0 0.0
  %595 = vmatpush1.msra.mxu0 0.0
  %596 = vmatprep.subr.mxu0 0.0
  %597 = vmatpush1.msra.mxu0 0.0
  %598 = vmatprep.subr.mxu0 0.0
  %599 = vmatpush1.msra.mxu0 0.0
  %600 = vmatprep.subr.mxu0 0.0
  %601 = vmatpush1.msra.mxu0 0.0
  %602 = vmatprep.subr.mxu0 0.0
  %603 = vmatpush1.msra.mxu0 0.0
  %604 = vmatprep.subr.mxu0 0.0
  %605 = vmatpush1.msra.mxu0 0.0
  %606 = vmatprep.subr.mxu0 0.0
  %607 = vmatpush1.msra.mxu0 0.0
  %608 = vmatprep.subr.mxu0 0.0
  %609 = vmatpush1.msra.mxu0 0.0
  %610 = vmatprep.subr.mxu0 0.0
  %611 = vmatpush1.msra.mxu0 0.0
  %612 = vmatprep.subr.mxu0 0.0
  %613 = vmatpush1.msra.mxu0 0.0
  %614 = vmatprep.subr.mxu0 0.0
  %615 = vmatpush1.msra.mxu0 0.0
  %616 = vmatprep.subr.mxu0 0.0
  %617 = vmatpush1.msra.mxu0 0.0
  %618 = vmatprep.subr.mxu0 0.0
  %619 = vmatpush1.msra.mxu0 %v576
  %620 = vmatprep.subr.mxu0 0.0
  %621 = vmatpush2.msra.mxu0 0.0
  %622 = vmatprep.subr.mxu0 0.0
  %623 = vmatpush2.msra.mxu0 0.0
  %624 = vmatprep.subr.mxu0 0.0
  %625 = vmatpush2.msra.mxu0 0.0
  %626 = vmatprep.subr.mxu0 0.0
  %627 = vmatpush2.msra.mxu0 0.0
  %628 = vmatprep.subr.mxu0 0.0
  %629 = vmatpush2.msra.mxu0 0.0
  %630 = vmatprep.subr.mxu0 0.0
  %631 = vmatpush2.msra.mxu0 0.0
  %632 = vmatprep.subr.mxu0 0.0
  %633 = vmatpush2.msra.mxu0 0.0
  %634 = vmatprep.subr.mxu0 0.0
  %635 = vmatpush2.msra.mxu0 0.0
  %636 = vmatprep.subr.mxu0 0.0
  %637 = vmatpush2.msra.mxu0 0.0
  %638 = vmatprep.subr.mxu0 0.0
  %639 = vmatpush2.msra.mxu0 0.0
  %640 = vmatprep.subr.mxu0 0.0
  %641 = vmatpush2.msra.mxu0 0.0
  %642 = vmatprep.subr.mxu0 0.0
  %643 = vmatpush2.msra.mxu0 0.0
  %644 = vmatprep.subr.mxu0 0.0
  %645 = vmatpush2.msra.mxu0 0.0
  %646 = vmatprep.subr.mxu0 0.0
  %647 = vmatpush2.msra.mxu0 0.0
  %648 = vmatprep.subr.mxu0 0.0
  %649 = vmatpush2.msra.mxu0 0.0
  %650 = vmatprep.subr.mxu0 0.0
  %651 = vmatpush2.msra.mxu0 0.0
  %652 = vmatprep.mubr.f32.mxu0 0.0
  %653 = vmatmul.mubr.f32.gmra.mxu0 %v586
  %v654 = vpop.f32.mrf.mxu0
  %v655 = vadd.f32 %v583, %v654
  %v656 = vpop.f32.mrf.mxu0
  %657 = vdwg.mxu0
  %v658 = vmax.f32 %v655, 0.0
  %s659 = scalar_lea.vmem %s3, 128
  %v660 = vld [vmem:[%s659] sm:$0xff]
  %v661 = vld [vmem:[%s659 + $0x8] sm:$0xff]
  %v662 = vld [vmem:[%s659 + $0x10] sm:$0xff]
  %v663 = vld [vmem:[%s659 + $0x18] sm:$0xff]
  %v664 = vld [vmem:[%s659 + $0x20] sm:$0xff]
  %v665 = vld [vmem:[%s659 + $0x28] sm:$0xff]
  %v666 = vld [vmem:[%s659 + $0x30] sm:$0xff]
  %v667 = vld [vmem:[%s659 + $0x38] sm:$0xff]
  %s668 = scalar_lea.vmem %s4, 2
  %v669 = vld [vmem:[%s668] sm:$0x1]
  %v671 = vlaneseq
  %v672 = vshrl.u32 %v671, 7
  %v673 = vsub.s32 0, %v672
  %v674 = vrot.slane %v669, %v673
  %v677 = vsel %vm127, %v658, 0
  %679 = vmatprep.subr.mxu0 0.0
  %680 = vmatpush1.msra.mxu0 0.0
  %681 = vmatprep.subr.mxu0 0.0
  %682 = vmatpush1.msra.mxu0 0.0
  %683 = vmatprep.subr.mxu0 0.0
  %684 = vmatpush1.msra.mxu0 0.0
  %685 = vmatprep.subr.mxu0 0.0
  %686 = vmatpush1.msra.mxu0 0.0
  %687 = vmatprep.subr.mxu0 0.0
  %688 = vmatpush1.msra.mxu0 0.0
  %689 = vmatprep.subr.mxu0 0.0
  %690 = vmatpush1.msra.mxu0 0.0
  %691 = vmatprep.subr.mxu0 0.0
  %692 = vmatpush1.msra.mxu0 0.0
  %693 = vmatprep.subr.mxu0 0.0
  %694 = vmatpush1.msra.mxu0 0.0
  %695 = vmatprep.subr.mxu0 0.0
  %696 = vmatpush1.msra.mxu0 %v667
  %697 = vmatprep.subr.mxu0 0.0
  %698 = vmatpush1.msra.mxu0 %v666
  %699 = vmatprep.subr.mxu0 0.0
  %700 = vmatpush1.msra.mxu0 %v665
  %701 = vmatprep.subr.mxu0 0.0
  %702 = vmatpush1.msra.mxu0 %v664
  %703 = vmatprep.subr.mxu0 0.0
  %704 = vmatpush1.msra.mxu0 %v663
  %705 = vmatprep.subr.mxu0 0.0
  %706 = vmatpush1.msra.mxu0 %v662
  %707 = vmatprep.subr.mxu0 0.0
  %708 = vmatpush1.msra.mxu0 %v661
  %709 = vmatprep.subr.mxu0 0.0
  %710 = vmatpush1.msra.mxu0 %v660
  %711 = vmatprep.subr.mxu0 0.0
  %712 = vmatpush2.msra.mxu0 0.0
  %713 = vmatprep.subr.mxu0 0.0
  %714 = vmatpush2.msra.mxu0 0.0
  %715 = vmatprep.subr.mxu0 0.0
  %716 = vmatpush2.msra.mxu0 0.0
  %717 = vmatprep.subr.mxu0 0.0
  %718 = vmatpush2.msra.mxu0 0.0
  %719 = vmatprep.subr.mxu0 0.0
  %720 = vmatpush2.msra.mxu0 0.0
  %721 = vmatprep.subr.mxu0 0.0
  %722 = vmatpush2.msra.mxu0 0.0
  %723 = vmatprep.subr.mxu0 0.0
  %724 = vmatpush2.msra.mxu0 0.0
  %725 = vmatprep.subr.mxu0 0.0
  %726 = vmatpush2.msra.mxu0 0.0
  %727 = vmatprep.subr.mxu0 0.0
  %728 = vmatpush2.msra.mxu0 0.0
  %729 = vmatprep.subr.mxu0 0.0
  %730 = vmatpush2.msra.mxu0 0.0
  %731 = vmatprep.subr.mxu0 0.0
  %732 = vmatpush2.msra.mxu0 0.0
  %733 = vmatprep.subr.mxu0 0.0
  %734 = vmatpush2.msra.mxu0 0.0
  %735 = vmatprep.subr.mxu0 0.0
  %736 = vmatpush2.msra.mxu0 0.0
  %737 = vmatprep.subr.mxu0 0.0
  %738 = vmatpush2.msra.mxu0 0.0
  %739 = vmatprep.subr.mxu0 0.0
  %740 = vmatpush2.msra.mxu0 0.0
  %741 = vmatprep.subr.mxu0 0.0
  %742 = vmatpush2.msra.mxu0 0.0
  %743 = vmatprep.mubr.f32.mxu0 0.0
  %744 = vmatmul.mubr.f32.gmra.mxu0 %v677
  %v745 = vpop.f32.mrf.mxu0
  %v746 = vadd.f32 %v674, %v745
  %v747 = vpop.f32.mrf.mxu0
  %748 = vdwg.mxu0
  %v749 = vmax.f32 %v746, 0.0
  %s750 = scalar_lea.vmem %s5, 128
  %v751 = vld [vmem:[%s750] sm:$0xff]
  %v752 = vld [vmem:[%s750 + $0x8] sm:$0xff]
  %v753 = vld [vmem:[%s750 + $0x10] sm:$0xff]
  %v754 = vld [vmem:[%s750 + $0x18] sm:$0xff]
  %v755 = vld [vmem:[%s750 + $0x20] sm:$0xff]
  %v756 = vld [vmem:[%s750 + $0x28] sm:$0xff]
  %v757 = vld [vmem:[%s750 + $0x30] sm:$0xff]
  %v758 = vld [vmem:[%s750 + $0x38] sm:$0xff]
  %s759 = scalar_lea.vmem %s6, 2
  %v760 = vld [vmem:[%s759] sm:$0x1]
  %v762 = vlaneseq
  %v763 = vshrl.u32 %v762, 7
  %v764 = vsub.s32 0, %v763
  %v765 = vrot.slane %v760, %v764
  %v768 = vsel %vm127, %v749, 0
  %770 = vmatprep.subr.mxu0 0.0
  %771 = vmatpush1.msra.mxu0 0.0
  %772 = vmatprep.subr.mxu0 0.0
  %773 = vmatpush1.msra.mxu0 0.0
  %774 = vmatprep.subr.mxu0 0.0
  %775 = vmatpush1.msra.mxu0 0.0
  %776 = vmatprep.subr.mxu0 0.0
  %777 = vmatpush1.msra.mxu0 0.0
  %778 = vmatprep.subr.mxu0 0.0
  %779 = vmatpush1.msra.mxu0 0.0
  %780 = vmatprep.subr.mxu0 0.0
  %781 = vmatpush1.msra.mxu0 0.0
  %782 = vmatprep.subr.mxu0 0.0
  %783 = vmatpush1.msra.mxu0 0.0
  %784 = vmatprep.subr.mxu0 0.0
  %785 = vmatpush1.msra.mxu0 0.0
  %786 = vmatprep.subr.mxu0 0.0
  %787 = vmatpush1.msra.mxu0 %v758
  %788 = vmatprep.subr.mxu0 0.0
  %789 = vmatpush1.msra.mxu0 %v757
  %790 = vmatprep.subr.mxu0 0.0
  %791 = vmatpush1.msra.mxu0 %v756
  %792 = vmatprep.subr.mxu0 0.0
  %793 = vmatpush1.msra.mxu0 %v755
  %794 = vmatprep.subr.mxu0 0.0
  %795 = vmatpush1.msra.mxu0 %v754
  %796 = vmatprep.subr.mxu0 0.0
  %797 = vmatpush1.msra.mxu0 %v753
  %798 = vmatprep.subr.mxu0 0.0
  %799 = vmatpush1.msra.mxu0 %v752
  %800 = vmatprep.subr.mxu0 0.0
  %801 = vmatpush1.msra.mxu0 %v751
  %802 = vmatprep.subr.mxu0 0.0
  %803 = vmatpush2.msra.mxu0 0.0
  %804 = vmatprep.subr.mxu0 0.0
  %805 = vmatpush2.msra.mxu0 0.0
  %806 = vmatprep.subr.mxu0 0.0
  %807 = vmatpush2.msra.mxu0 0.0
  %808 = vmatprep.subr.mxu0 0.0
  %809 = vmatpush2.msra.mxu0 0.0
  %810 = vmatprep.subr.mxu0 0.0
  %811 = vmatpush2.msra.mxu0 0.0
  %812 = vmatprep.subr.mxu0 0.0
  %813 = vmatpush2.msra.mxu0 0.0
  %814 = vmatprep.subr.mxu0 0.0
  %815 = vmatpush2.msra.mxu0 0.0
  %816 = vmatprep.subr.mxu0 0.0
  %817 = vmatpush2.msra.mxu0 0.0
  %818 = vmatprep.subr.mxu0 0.0
  %819 = vmatpush2.msra.mxu0 0.0
  %820 = vmatprep.subr.mxu0 0.0
  %821 = vmatpush2.msra.mxu0 0.0
  %822 = vmatprep.subr.mxu0 0.0
  %823 = vmatpush2.msra.mxu0 0.0
  %824 = vmatprep.subr.mxu0 0.0
  %825 = vmatpush2.msra.mxu0 0.0
  %826 = vmatprep.subr.mxu0 0.0
  %827 = vmatpush2.msra.mxu0 0.0
  %828 = vmatprep.subr.mxu0 0.0
  %829 = vmatpush2.msra.mxu0 0.0
  %830 = vmatprep.subr.mxu0 0.0
  %831 = vmatpush2.msra.mxu0 0.0
  %832 = vmatprep.subr.mxu0 0.0
  %833 = vmatpush2.msra.mxu0 0.0
  %834 = vmatprep.mubr.f32.mxu0 0.0
  %835 = vmatmul.mubr.f32.gmra.mxu0 %v768
  %v836 = vpop.f32.mrf.mxu0
  %v837 = vadd.f32 %v765, %v836
  %v838 = vpop.f32.mrf.mxu0
  %839 = vdwg.mxu0
  %v840 = vtanh.pop %v837
  %v841 = vmul.f32 %v840, 1.442695
  %v842 = vpow.pop %v841
  %v843 = vmul.f32 %v573, %v842
  %845 = vrot.lane.b32.xlu0 %v837, 120
  %v846 = vpop.permute.xlu0 %845
  %v848 = vadd.f32 %v843, %v846
  %v849 = vadd.f32 %v574, %v840
  %s850 = scalar_lea.vmem %s1, 24
  %v851 = vld [vmem:[%s850] sm:$0xff]
  %s852 = scalar_lea.vmem %s2, 3
  %v853 = vld [vmem:[%s852] sm:$0x1]
  %v855 = vlaneseq
  %v856 = vshrl.u32 %v855, 7
  %v857 = vsub.s32 0, %v856
  %v858 = vrot.slane %v853, %v857
  %v861 = vsel %vm37, %v848, 0
  %863 = vmatprep.subr.mxu0 0.0
  %864 = vmatpush1.msra.mxu0 0.0
  %865 = vmatprep.subr.mxu0 0.0
  %866 = vmatpush1.msra.mxu0 0.0
  %867 = vmatprep.subr.mxu0 0.0
  %868 = vmatpush1.msra.mxu0 0.0
  %869 = vmatprep.subr.mxu0 0.0
  %870 = vmatpush1.msra.mxu0 0.0
  %871 = vmatprep.subr.mxu0 0.0
  %872 = vmatpush1.msra.mxu0 0.0
  %873 = vmatprep.subr.mxu0 0.0
  %874 = vmatpush1.msra.mxu0 0.0
  %875 = vmatprep.subr.mxu0 0.0
  %876 = vmatpush1.msra.mxu0 0.0
  %877 = vmatprep.subr.mxu0 0.0
  %878 = vmatpush1.msra.mxu0 0.0
  %879 = vmatprep.subr.mxu0 0.0
  %880 = vmatpush1.msra.mxu0 0.0
  %881 = vmatprep.subr.mxu0 0.0
  %882 = vmatpush1.msra.mxu0 0.0
  %883 = vmatprep.subr.mxu0 0.0
  %884 = vmatpush1.msra.mxu0 0.0
  %885 = vmatprep.subr.mxu0 0.0
  %886 = vmatpush1.msra.mxu0 0.0
  %887 = vmatprep.subr.mxu0 0.0
  %888 = vmatpush1.msra.mxu0 0.0
  %889 = vmatprep.subr.mxu0 0.0
  %890 = vmatpush1.msra.mxu0 0.0
  %891 = vmatprep.subr.mxu0 0.0
  %892 = vmatpush1.msra.mxu0 0.0
  %893 = vmatprep.subr.mxu0 0.0
  %894 = vmatpush1.msra.mxu0 %v851
  %895 = vmatprep.subr.mxu0 0.0
  %896 = vmatpush2.msra.mxu0 0.0
  %897 = vmatprep.subr.mxu0 0.0
  %898 = vmatpush2.msra.mxu0 0.0
  %899 = vmatprep.subr.mxu0 0.0
  %900 = vmatpush2.msra.mxu0 0.0
  %901 = vmatprep.subr.mxu0 0.0
  %902 = vmatpush2.msra.mxu0 0.0
  %903 = vmatprep.subr.mxu0 0.0
  %904 = vmatpush2.msra.mxu0 0.0
  %905 = vmatprep.subr.mxu0 0.0
  %906 = vmatpush2.msra.mxu0 0.0
  %907 = vmatprep.subr.mxu0 0.0
  %908 = vmatpush2.msra.mxu0 0.0
  %909 = vmatprep.subr.mxu0 0.0
  %910 = vmatpush2.msra.mxu0 0.0
  %911 = vmatprep.subr.mxu0 0.0
  %912 = vmatpush2.msra.mxu0 0.0
  %913 = vmatprep.subr.mxu0 0.0
  %914 = vmatpush2.msra.mxu0 0.0
  %915 = vmatprep.subr.mxu0 0.0
  %916 = vmatpush2.msra.mxu0 0.0
  %917 = vmatprep.subr.mxu0 0.0
  %918 = vmatpush2.msra.mxu0 0.0
  %919 = vmatprep.subr.mxu0 0.0
  %920 = vmatpush2.msra.mxu0 0.0
  %921 = vmatprep.subr.mxu0 0.0
  %922 = vmatpush2.msra.mxu0 0.0
  %923 = vmatprep.subr.mxu0 0.0
  %924 = vmatpush2.msra.mxu0 0.0
  %925 = vmatprep.subr.mxu0 0.0
  %926 = vmatpush2.msra.mxu0 0.0
  %927 = vmatprep.mubr.f32.mxu0 0.0
  %928 = vmatmul.mubr.f32.gmra.mxu0 %v861
  %v929 = vpop.f32.mrf.mxu0
  %v930 = vadd.f32 %v858, %v929
  %v931 = vpop.f32.mrf.mxu0
  %932 = vdwg.mxu0
  %v933 = vmax.f32 %v930, 0.0
  %s934 = scalar_lea.vmem %s3, 192
  %v935 = vld [vmem:[%s934] sm:$0xff]
  %v936 = vld [vmem:[%s934 + $0x8] sm:$0xff]
  %v937 = vld [vmem:[%s934 + $0x10] sm:$0xff]
  %v938 = vld [vmem:[%s934 + $0x18] sm:$0xff]
  %v939 = vld [vmem:[%s934 + $0x20] sm:$0xff]
  %v940 = vld [vmem:[%s934 + $0x28] sm:$0xff]
  %v941 = vld [vmem:[%s934 + $0x30] sm:$0xff]
  %v942 = vld [vmem:[%s934 + $0x38] sm:$0xff]
  %s943 = scalar_lea.vmem %s4, 3
  %v944 = vld [vmem:[%s943] sm:$0x1]
  %v946 = vlaneseq
  %v947 = vshrl.u32 %v946, 7
  %v948 = vsub.s32 0, %v947
  %v949 = vrot.slane %v944, %v948
  %v952 = vsel %vm127, %v933, 0
  %954 = vmatprep.subr.mxu0 0.0
  %955 = vmatpush1.msra.mxu0 0.0
  %956 = vmatprep.subr.mxu0 0.0
  %957 = vmatpush1.msra.mxu0 0.0
  %958 = vmatprep.subr.mxu0 0.0
  %959 = vmatpush1.msra.mxu0 0.0
  %960 = vmatprep.subr.mxu0 0.0
  %961 = vmatpush1.msra.mxu0 0.0
  %962 = vmatprep.subr.mxu0 0.0
  %963 = vmatpush1.msra.mxu0 0.0
  %964 = vmatprep.subr.mxu0 0.0
  %965 = vmatpush1.msra.mxu0 0.0
  %966 = vmatprep.subr.mxu0 0.0
  %967 = vmatpush1.msra.mxu0 0.0
  %968 = vmatprep.subr.mxu0 0.0
  %969 = vmatpush1.msra.mxu0 0.0
  %970 = vmatprep.subr.mxu0 0.0
  %971 = vmatpush1.msra.mxu0 %v942
  %972 = vmatprep.subr.mxu0 0.0
  %973 = vmatpush1.msra.mxu0 %v941
  %974 = vmatprep.subr.mxu0 0.0
  %975 = vmatpush1.msra.mxu0 %v940
  %976 = vmatprep.subr.mxu0 0.0
  %977 = vmatpush1.msra.mxu0 %v939
  %978 = vmatprep.subr.mxu0 0.0
  %979 = vmatpush1.msra.mxu0 %v938
  %980 = vmatprep.subr.mxu0 0.0
  %981 = vmatpush1.msra.mxu0 %v937
  %982 = vmatprep.subr.mxu0 0.0
  %983 = vmatpush1.msra.mxu0 %v936
  %984 = vmatprep.subr.mxu0 0.0
  %985 = vmatpush1.msra.mxu0 %v935
  %986 = vmatprep.subr.mxu0 0.0
  %987 = vmatpush2.msra.mxu0 0.0
  %988 = vmatprep.subr.mxu0 0.0
  %989 = vmatpush2.msra.mxu0 0.0
  %990 = vmatprep.subr.mxu0 0.0
  %991 = vmatpush2.msra.mxu0 0.0
  %992 = vmatprep.subr.mxu0 0.0
  %993 = vmatpush2.msra.mxu0 0.0
  %994 = vmatprep.subr.mxu0 0.0
  %995 = vmatpush2.msra.mxu0 0.0
  %996 = vmatprep.subr.mxu0 0.0
  %997 = vmatpush2.msra.mxu0 0.0
  %998 = vmatprep.subr.mxu0 0.0
  %999 = vmatpush2.msra.mxu0 0.0
  %1000 = vmatprep.subr.mxu0 0.0
  %1001 = vmatpush2.msra.mxu0 0.0
  %1002 = vmatprep.subr.mxu0 0.0
  %1003 = vmatpush2.msra.mxu0 0.0
  %1004 = vmatprep.subr.mxu0 0.0
  %1005 = vmatpush2.msra.mxu0 0.0
  %1006 = vmatprep.subr.mxu0 0.0
  %1007 = vmatpush2.msra.mxu0 0.0
  %1008 = vmatprep.subr.mxu0 0.0
  %1009 = vmatpush2.msra.mxu0 0.0
  %1010 = vmatprep.subr.mxu0 0.0
  %1011 = vmatpush2.msra.mxu0 0.0
  %1012 = vmatprep.subr.mxu0 0.0
  %1013 = vmatpush2.msra.mxu0 0.0
  %1014 = vmatprep.subr.mxu0 0.0
  %1015 = vmatpush2.msra.mxu0 0.0
  %1016 = vmatprep.subr.mxu0 0.0
  %1017 = vmatpush2.msra.mxu0 0.0
  %1018 = vmatprep.mubr.f32.mxu0 0.0
  %1019 = vmatmul.mubr.f32.gmra.mxu0 %v952
  %v1020 = vpop.f32.mrf.mxu0
  %v1021 = vadd.f32 %v949, %v1020
  %v1022 = vpop.f32.mrf.mxu0
  %1023 = vdwg.mxu0
  %v1024 = vmax.f32 %v1021, 0.0
  %s1025 = scalar_lea.vmem %s5, 192
  %v1026 = vld [vmem:[%s1025] sm:$0xff]
  %v1027 = vld [vmem:[%s1025 + $0x8] sm:$0xff]
  %v1028 = vld [vmem:[%s1025 + $0x10] sm:$0xff]
  %v1029 = vld [vmem:[%s1025 + $0x18] sm:$0xff]
  %v1030 = vld [vmem:[%s1025 + $0x20] sm:$0xff]
  %v1031 = vld [vmem:[%s1025 + $0x28] sm:$0xff]
  %v1032 = vld [vmem:[%s1025 + $0x30] sm:$0xff]
  %v1033 = vld [vmem:[%s1025 + $0x38] sm:$0xff]
  %s1034 = scalar_lea.vmem %s6, 3
  %v1035 = vld [vmem:[%s1034] sm:$0x1]
  %v1037 = vlaneseq
  %v1038 = vshrl.u32 %v1037, 7
  %v1039 = vsub.s32 0, %v1038
  %v1040 = vrot.slane %v1035, %v1039
  %v1043 = vsel %vm127, %v1024, 0
  %1045 = vmatprep.subr.mxu0 0.0
  %1046 = vmatpush1.msra.mxu0 0.0
  %1047 = vmatprep.subr.mxu0 0.0
  %1048 = vmatpush1.msra.mxu0 0.0
  %1049 = vmatprep.subr.mxu0 0.0
  %1050 = vmatpush1.msra.mxu0 0.0
  %1051 = vmatprep.subr.mxu0 0.0
  %1052 = vmatpush1.msra.mxu0 0.0
  %1053 = vmatprep.subr.mxu0 0.0
  %1054 = vmatpush1.msra.mxu0 0.0
  %1055 = vmatprep.subr.mxu0 0.0
  %1056 = vmatpush1.msra.mxu0 0.0
  %1057 = vmatprep.subr.mxu0 0.0
  %1058 = vmatpush1.msra.mxu0 0.0
  %1059 = vmatprep.subr.mxu0 0.0
  %1060 = vmatpush1.msra.mxu0 0.0
  %1061 = vmatprep.subr.mxu0 0.0
  %1062 = vmatpush1.msra.mxu0 %v1033
  %1063 = vmatprep.subr.mxu0 0.0
  %1064 = vmatpush1.msra.mxu0 %v1032
  %1065 = vmatprep.subr.mxu0 0.0
  %1066 = vmatpush1.msra.mxu0 %v1031
  %1067 = vmatprep.subr.mxu0 0.0
  %1068 = vmatpush1.msra.mxu0 %v1030
  %1069 = vmatprep.subr.mxu0 0.0
  %1070 = vmatpush1.msra.mxu0 %v1029
  %1071 = vmatprep.subr.mxu0 0.0
  %1072 = vmatpush1.msra.mxu0 %v1028
  %1073 = vmatprep.subr.mxu0 0.0
  %1074 = vmatpush1.msra.mxu0 %v1027
  %1075 = vmatprep.subr.mxu0 0.0
  %1076 = vmatpush1.msra.mxu0 %v1026
  %1077 = vmatprep.subr.mxu0 0.0
  %1078 = vmatpush2.msra.mxu0 0.0
  %1079 = vmatprep.subr.mxu0 0.0
  %1080 = vmatpush2.msra.mxu0 0.0
  %1081 = vmatprep.subr.mxu0 0.0
  %1082 = vmatpush2.msra.mxu0 0.0
  %1083 = vmatprep.subr.mxu0 0.0
  %1084 = vmatpush2.msra.mxu0 0.0
  %1085 = vmatprep.subr.mxu0 0.0
  %1086 = vmatpush2.msra.mxu0 0.0
  %1087 = vmatprep.subr.mxu0 0.0
  %1088 = vmatpush2.msra.mxu0 0.0
  %1089 = vmatprep.subr.mxu0 0.0
  %1090 = vmatpush2.msra.mxu0 0.0
  %1091 = vmatprep.subr.mxu0 0.0
  %1092 = vmatpush2.msra.mxu0 0.0
  %1093 = vmatprep.subr.mxu0 0.0
  %1094 = vmatpush2.msra.mxu0 0.0
  %1095 = vmatprep.subr.mxu0 0.0
  %1096 = vmatpush2.msra.mxu0 0.0
  %1097 = vmatprep.subr.mxu0 0.0
  %1098 = vmatpush2.msra.mxu0 0.0
  %1099 = vmatprep.subr.mxu0 0.0
  %1100 = vmatpush2.msra.mxu0 0.0
  %1101 = vmatprep.subr.mxu0 0.0
  %1102 = vmatpush2.msra.mxu0 0.0
  %1103 = vmatprep.subr.mxu0 0.0
  %1104 = vmatpush2.msra.mxu0 0.0
  %1105 = vmatprep.subr.mxu0 0.0
  %1106 = vmatpush2.msra.mxu0 0.0
  %1107 = vmatprep.subr.mxu0 0.0
  %1108 = vmatpush2.msra.mxu0 0.0
  %1109 = vmatprep.mubr.f32.mxu0 0.0
  %1110 = vmatmul.mubr.f32.gmra.mxu0 %v1043
  %v1111 = vpop.f32.mrf.mxu0
  %v1112 = vadd.f32 %v1040, %v1111
  %v1113 = vpop.f32.mrf.mxu0
  %1114 = vdwg.mxu0
  %v1115 = vtanh.pop %v1112
  %v1116 = vmul.f32 %v1115, 1.442695
  %v1117 = vpow.pop %v1116
  %v1118 = vmul.f32 %v848, %v1117
  %1120 = vrot.lane.b32.xlu0 %v1112, 120
  %v1121 = vpop.permute.xlu0 %1120
  %v1123 = vadd.f32 %v1118, %v1121
  %v1124 = vadd.f32 %v849, %v1115
  %s1125 = scalar_lea.vmem %s1, 32
  %v1126 = vld [vmem:[%s1125] sm:$0xff]
  %s1127 = scalar_lea.vmem %s2, 4
  %v1128 = vld [vmem:[%s1127] sm:$0x1]
  %v1130 = vlaneseq
  %v1131 = vshrl.u32 %v1130, 7
  %v1132 = vsub.s32 0, %v1131
  %v1133 = vrot.slane %v1128, %v1132
  %v1136 = vsel %vm37, %v1123, 0
  %1138 = vmatprep.subr.mxu0 0.0
  %1139 = vmatpush1.msra.mxu0 0.0
  %1140 = vmatprep.subr.mxu0 0.0
  %1141 = vmatpush1.msra.mxu0 0.0
  %1142 = vmatprep.subr.mxu0 0.0
  %1143 = vmatpush1.msra.mxu0 0.0
  %1144 = vmatprep.subr.mxu0 0.0
  %1145 = vmatpush1.msra.mxu0 0.0
  %1146 = vmatprep.subr.mxu0 0.0
  %1147 = vmatpush1.msra.mxu0 0.0
  %1148 = vmatprep.subr.mxu0 0.0
  %1149 = vmatpush1.msra.mxu0 0.0
  %1150 = vmatprep.subr.mxu0 0.0
  %1151 = vmatpush1.msra.mxu0 0.0
  %1152 = vmatprep.subr.mxu0 0.0
  %1153 = vmatpush1.msra.mxu0 0.0
  %1154 = vmatprep.subr.mxu0 0.0
  %1155 = vmatpush1.msra.mxu0 0.0
  %1156 = vmatprep.subr.mxu0 0.0
  %1157 = vmatpush1.msra.mxu0 0.0
  %1158 = vmatprep.subr.mxu0 0.0
  %1159 = vmatpush1.msra.mxu0 0.0
  %1160 = vmatprep.subr.mxu0 0.0
  %1161 = vmatpush1.msra.mxu0 0.0
  %1162 = vmatprep.subr.mxu0 0.0
  %1163 = vmatpush1.msra.mxu0 0.0
  %1164 = vmatprep.subr.mxu0 0.0
  %1165 = vmatpush1.msra.mxu0 0.0
  %1166 = vmatprep.subr.mxu0 0.0
  %1167 = vmatpush1.msra.mxu0 0.0
  %1168 = vmatprep.subr.mxu0 0.0
  %1169 = vmatpush1.msra.mxu0 %v1126
  %1170 = vmatprep.subr.mxu0 0.0
  %1171 = vmatpush2.msra.mxu0 0.0
  %1172 = vmatprep.subr.mxu0 0.0
  %1173 = vmatpush2.msra.mxu0 0.0
  %1174 = vmatprep.subr.mxu0 0.0
  %1175 = vmatpush2.msra.mxu0 0.0
  %1176 = vmatprep.subr.mxu0 0.0
  %1177 = vmatpush2.msra.mxu0 0.0
  %1178 = vmatprep.subr.mxu0 0.0
  %1179 = vmatpush2.msra.mxu0 0.0
  %1180 = vmatprep.subr.mxu0 0.0
  %1181 = vmatpush2.msra.mxu0 0.0
  %1182 = vmatprep.subr.mxu0 0.0
  %1183 = vmatpush2.msra.mxu0 0.0
  %1184 = vmatprep.subr.mxu0 0.0
  %1185 = vmatpush2.msra.mxu0 0.0
  %1186 = vmatprep.subr.mxu0 0.0
  %1187 = vmatpush2.msra.mxu0 0.0
  %1188 = vmatprep.subr.mxu0 0.0
  %1189 = vmatpush2.msra.mxu0 0.0
  %1190 = vmatprep.subr.mxu0 0.0
  %1191 = vmatpush2.msra.mxu0 0.0
  %1192 = vmatprep.subr.mxu0 0.0
  %1193 = vmatpush2.msra.mxu0 0.0
  %1194 = vmatprep.subr.mxu0 0.0
  %1195 = vmatpush2.msra.mxu0 0.0
  %1196 = vmatprep.subr.mxu0 0.0
  %1197 = vmatpush2.msra.mxu0 0.0
  %1198 = vmatprep.subr.mxu0 0.0
  %1199 = vmatpush2.msra.mxu0 0.0
  %1200 = vmatprep.subr.mxu0 0.0
  %1201 = vmatpush2.msra.mxu0 0.0
  %1202 = vmatprep.mubr.f32.mxu0 0.0
  %1203 = vmatmul.mubr.f32.gmra.mxu0 %v1136
  %v1204 = vpop.f32.mrf.mxu0
  %v1205 = vadd.f32 %v1133, %v1204
  %v1206 = vpop.f32.mrf.mxu0
  %1207 = vdwg.mxu0
  %v1208 = vmax.f32 %v1205, 0.0
  %s1209 = scalar_lea.vmem %s3, 256
  %v1210 = vld [vmem:[%s1209] sm:$0xff]
  %v1211 = vld [vmem:[%s1209 + $0x8] sm:$0xff]
  %v1212 = vld [vmem:[%s1209 + $0x10] sm:$0xff]
  %v1213 = vld [vmem:[%s1209 + $0x18] sm:$0xff]
  %v1214 = vld [vmem:[%s1209 + $0x20] sm:$0xff]
  %v1215 = vld [vmem:[%s1209 + $0x28] sm:$0xff]
  %v1216 = vld [vmem:[%s1209 + $0x30] sm:$0xff]
  %v1217 = vld [vmem:[%s1209 + $0x38] sm:$0xff]
  %s1218 = scalar_lea.vmem %s4, 4
  %v1219 = vld [vmem:[%s1218] sm:$0x1]
  %v1221 = vlaneseq
  %v1222 = vshrl.u32 %v1221, 7
  %v1223 = vsub.s32 0, %v1222
  %v1224 = vrot.slane %v1219, %v1223
  %v1227 = vsel %vm127, %v1208, 0
  %1229 = vmatprep.subr.mxu0 0.0
  %1230 = vmatpush1.msra.mxu0 0.0
  %1231 = vmatprep.subr.mxu0 0.0
  %1232 = vmatpush1.msra.mxu0 0.0
  %1233 = vmatprep.subr.mxu0 0.0
  %1234 = vmatpush1.msra.mxu0 0.0
  %1235 = vmatprep.subr.mxu0 0.0
  %1236 = vmatpush1.msra.mxu0 0.0
  %1237 = vmatprep.subr.mxu0 0.0
  %1238 = vmatpush1.msra.mxu0 0.0
  %1239 = vmatprep.subr.mxu0 0.0
  %1240 = vmatpush1.msra.mxu0 0.0
  %1241 = vmatprep.subr.mxu0 0.0
  %1242 = vmatpush1.msra.mxu0 0.0
  %1243 = vmatprep.subr.mxu0 0.0
  %1244 = vmatpush1.msra.mxu0 0.0
  %1245 = vmatprep.subr.mxu0 0.0
  %1246 = vmatpush1.msra.mxu0 %v1217
  %1247 = vmatprep.subr.mxu0 0.0
  %1248 = vmatpush1.msra.mxu0 %v1216
  %1249 = vmatprep.subr.mxu0 0.0
  %1250 = vmatpush1.msra.mxu0 %v1215
  %1251 = vmatprep.subr.mxu0 0.0
  %1252 = vmatpush1.msra.mxu0 %v1214
  %1253 = vmatprep.subr.mxu0 0.0
  %1254 = vmatpush1.msra.mxu0 %v1213
  %1255 = vmatprep.subr.mxu0 0.0
  %1256 = vmatpush1.msra.mxu0 %v1212
  %1257 = vmatprep.subr.mxu0 0.0
  %1258 = vmatpush1.msra.mxu0 %v1211
  %1259 = vmatprep.subr.mxu0 0.0
  %1260 = vmatpush1.msra.mxu0 %v1210
  %1261 = vmatprep.subr.mxu0 0.0
  %1262 = vmatpush2.msra.mxu0 0.0
  %1263 = vmatprep.subr.mxu0 0.0
  %1264 = vmatpush2.msra.mxu0 0.0
  %1265 = vmatprep.subr.mxu0 0.0
  %1266 = vmatpush2.msra.mxu0 0.0
  %1267 = vmatprep.subr.mxu0 0.0
  %1268 = vmatpush2.msra.mxu0 0.0
  %1269 = vmatprep.subr.mxu0 0.0
  %1270 = vmatpush2.msra.mxu0 0.0
  %1271 = vmatprep.subr.mxu0 0.0
  %1272 = vmatpush2.msra.mxu0 0.0
  %1273 = vmatprep.subr.mxu0 0.0
  %1274 = vmatpush2.msra.mxu0 0.0
  %1275 = vmatprep.subr.mxu0 0.0
  %1276 = vmatpush2.msra.mxu0 0.0
  %1277 = vmatprep.subr.mxu0 0.0
  %1278 = vmatpush2.msra.mxu0 0.0
  %1279 = vmatprep.subr.mxu0 0.0
  %1280 = vmatpush2.msra.mxu0 0.0
  %1281 = vmatprep.subr.mxu0 0.0
  %1282 = vmatpush2.msra.mxu0 0.0
  %1283 = vmatprep.subr.mxu0 0.0
  %1284 = vmatpush2.msra.mxu0 0.0
  %1285 = vmatprep.subr.mxu0 0.0
  %1286 = vmatpush2.msra.mxu0 0.0
  %1287 = vmatprep.subr.mxu0 0.0
  %1288 = vmatpush2.msra.mxu0 0.0
  %1289 = vmatprep.subr.mxu0 0.0
  %1290 = vmatpush2.msra.mxu0 0.0
  %1291 = vmatprep.subr.mxu0 0.0
  %1292 = vmatpush2.msra.mxu0 0.0
  %1293 = vmatprep.mubr.f32.mxu0 0.0
  %1294 = vmatmul.mubr.f32.gmra.mxu0 %v1227
  %v1295 = vpop.f32.mrf.mxu0
  %v1296 = vadd.f32 %v1224, %v1295
  %v1297 = vpop.f32.mrf.mxu0
  %1298 = vdwg.mxu0
  %v1299 = vmax.f32 %v1296, 0.0
  %s1300 = scalar_lea.vmem %s5, 256
  %v1301 = vld [vmem:[%s1300] sm:$0xff]
  %v1302 = vld [vmem:[%s1300 + $0x8] sm:$0xff]
  %v1303 = vld [vmem:[%s1300 + $0x10] sm:$0xff]
  %v1304 = vld [vmem:[%s1300 + $0x18] sm:$0xff]
  %v1305 = vld [vmem:[%s1300 + $0x20] sm:$0xff]
  %v1306 = vld [vmem:[%s1300 + $0x28] sm:$0xff]
  %v1307 = vld [vmem:[%s1300 + $0x30] sm:$0xff]
  %v1308 = vld [vmem:[%s1300 + $0x38] sm:$0xff]
  %s1309 = scalar_lea.vmem %s6, 4
  %v1310 = vld [vmem:[%s1309] sm:$0x1]
  %v1312 = vlaneseq
  %v1313 = vshrl.u32 %v1312, 7
  %v1314 = vsub.s32 0, %v1313
  %v1315 = vrot.slane %v1310, %v1314
  %v1318 = vsel %vm127, %v1299, 0
  %1320 = vmatprep.subr.mxu0 0.0
  %1321 = vmatpush1.msra.mxu0 0.0
  %1322 = vmatprep.subr.mxu0 0.0
  %1323 = vmatpush1.msra.mxu0 0.0
  %1324 = vmatprep.subr.mxu0 0.0
  %1325 = vmatpush1.msra.mxu0 0.0
  %1326 = vmatprep.subr.mxu0 0.0
  %1327 = vmatpush1.msra.mxu0 0.0
  %1328 = vmatprep.subr.mxu0 0.0
  %1329 = vmatpush1.msra.mxu0 0.0
  %1330 = vmatprep.subr.mxu0 0.0
  %1331 = vmatpush1.msra.mxu0 0.0
  %1332 = vmatprep.subr.mxu0 0.0
  %1333 = vmatpush1.msra.mxu0 0.0
  %1334 = vmatprep.subr.mxu0 0.0
  %1335 = vmatpush1.msra.mxu0 0.0
  %1336 = vmatprep.subr.mxu0 0.0
  %1337 = vmatpush1.msra.mxu0 %v1308
  %1338 = vmatprep.subr.mxu0 0.0
  %1339 = vmatpush1.msra.mxu0 %v1307
  %1340 = vmatprep.subr.mxu0 0.0
  %1341 = vmatpush1.msra.mxu0 %v1306
  %1342 = vmatprep.subr.mxu0 0.0
  %1343 = vmatpush1.msra.mxu0 %v1305
  %1344 = vmatprep.subr.mxu0 0.0
  %1345 = vmatpush1.msra.mxu0 %v1304
  %1346 = vmatprep.subr.mxu0 0.0
  %1347 = vmatpush1.msra.mxu0 %v1303
  %1348 = vmatprep.subr.mxu0 0.0
  %1349 = vmatpush1.msra.mxu0 %v1302
  %1350 = vmatprep.subr.mxu0 0.0
  %1351 = vmatpush1.msra.mxu0 %v1301
  %1352 = vmatprep.subr.mxu0 0.0
  %1353 = vmatpush2.msra.mxu0 0.0
  %1354 = vmatprep.subr.mxu0 0.0
  %1355 = vmatpush2.msra.mxu0 0.0
  %1356 = vmatprep.subr.mxu0 0.0
  %1357 = vmatpush2.msra.mxu0 0.0
  %1358 = vmatprep.subr.mxu0 0.0
  %1359 = vmatpush2.msra.mxu0 0.0
  %1360 = vmatprep.subr.mxu0 0.0
  %1361 = vmatpush2.msra.mxu0 0.0
  %1362 = vmatprep.subr.mxu0 0.0
  %1363 = vmatpush2.msra.mxu0 0.0
  %1364 = vmatprep.subr.mxu0 0.0
  %1365 = vmatpush2.msra.mxu0 0.0
  %1366 = vmatprep.subr.mxu0 0.0
  %1367 = vmatpush2.msra.mxu0 0.0
  %1368 = vmatprep.subr.mxu0 0.0
  %1369 = vmatpush2.msra.mxu0 0.0
  %1370 = vmatprep.subr.mxu0 0.0
  %1371 = vmatpush2.msra.mxu0 0.0
  %1372 = vmatprep.subr.mxu0 0.0
  %1373 = vmatpush2.msra.mxu0 0.0
  %1374 = vmatprep.subr.mxu0 0.0
  %1375 = vmatpush2.msra.mxu0 0.0
  %1376 = vmatprep.subr.mxu0 0.0
  %1377 = vmatpush2.msra.mxu0 0.0
  %1378 = vmatprep.subr.mxu0 0.0
  %1379 = vmatpush2.msra.mxu0 0.0
  %1380 = vmatprep.subr.mxu0 0.0
  %1381 = vmatpush2.msra.mxu0 0.0
  %1382 = vmatprep.subr.mxu0 0.0
  %1383 = vmatpush2.msra.mxu0 0.0
  %1384 = vmatprep.mubr.f32.mxu0 0.0
  %1385 = vmatmul.mubr.f32.gmra.mxu0 %v1318
  %v1386 = vpop.f32.mrf.mxu0
  %v1387 = vadd.f32 %v1315, %v1386
  %v1388 = vpop.f32.mrf.mxu0
  %1389 = vdwg.mxu0
  %v1390 = vtanh.pop %v1387
  %v1391 = vmul.f32 %v1390, 1.442695
  %v1392 = vpow.pop %v1391
  %v1393 = vmul.f32 %v1123, %v1392
  %1395 = vrot.lane.b32.xlu0 %v1387, 120
  %v1396 = vpop.permute.xlu0 %1395
  %v1398 = vadd.f32 %v1393, %v1396
  %v1399 = vadd.f32 %v1124, %v1390
  %s1400 = scalar_lea.vmem %s1, 40
  %v1401 = vld [vmem:[%s1400] sm:$0xff]
  %s1402 = scalar_lea.vmem %s2, 5
  %v1403 = vld [vmem:[%s1402] sm:$0x1]
  %v1405 = vlaneseq
  %v1406 = vshrl.u32 %v1405, 7
  %v1407 = vsub.s32 0, %v1406
  %v1408 = vrot.slane %v1403, %v1407
  %v1411 = vsel %vm37, %v1398, 0
  %1413 = vmatprep.subr.mxu0 0.0
  %1414 = vmatpush1.msra.mxu0 0.0
  %1415 = vmatprep.subr.mxu0 0.0
  %1416 = vmatpush1.msra.mxu0 0.0
  %1417 = vmatprep.subr.mxu0 0.0
  %1418 = vmatpush1.msra.mxu0 0.0
  %1419 = vmatprep.subr.mxu0 0.0
  %1420 = vmatpush1.msra.mxu0 0.0
  %1421 = vmatprep.subr.mxu0 0.0
  %1422 = vmatpush1.msra.mxu0 0.0
  %1423 = vmatprep.subr.mxu0 0.0
  %1424 = vmatpush1.msra.mxu0 0.0
  %1425 = vmatprep.subr.mxu0 0.0
  %1426 = vmatpush1.msra.mxu0 0.0
  %1427 = vmatprep.subr.mxu0 0.0
  %1428 = vmatpush1.msra.mxu0 0.0
  %1429 = vmatprep.subr.mxu0 0.0
  %1430 = vmatpush1.msra.mxu0 0.0
  %1431 = vmatprep.subr.mxu0 0.0
  %1432 = vmatpush1.msra.mxu0 0.0
  %1433 = vmatprep.subr.mxu0 0.0
  %1434 = vmatpush1.msra.mxu0 0.0
  %1435 = vmatprep.subr.mxu0 0.0
  %1436 = vmatpush1.msra.mxu0 0.0
  %1437 = vmatprep.subr.mxu0 0.0
  %1438 = vmatpush1.msra.mxu0 0.0
  %1439 = vmatprep.subr.mxu0 0.0
  %1440 = vmatpush1.msra.mxu0 0.0
  %1441 = vmatprep.subr.mxu0 0.0
  %1442 = vmatpush1.msra.mxu0 0.0
  %1443 = vmatprep.subr.mxu0 0.0
  %1444 = vmatpush1.msra.mxu0 %v1401
  %1445 = vmatprep.subr.mxu0 0.0
  %1446 = vmatpush2.msra.mxu0 0.0
  %1447 = vmatprep.subr.mxu0 0.0
  %1448 = vmatpush2.msra.mxu0 0.0
  %1449 = vmatprep.subr.mxu0 0.0
  %1450 = vmatpush2.msra.mxu0 0.0
  %1451 = vmatprep.subr.mxu0 0.0
  %1452 = vmatpush2.msra.mxu0 0.0
  %1453 = vmatprep.subr.mxu0 0.0
  %1454 = vmatpush2.msra.mxu0 0.0
  %1455 = vmatprep.subr.mxu0 0.0
  %1456 = vmatpush2.msra.mxu0 0.0
  %1457 = vmatprep.subr.mxu0 0.0
  %1458 = vmatpush2.msra.mxu0 0.0
  %1459 = vmatprep.subr.mxu0 0.0
  %1460 = vmatpush2.msra.mxu0 0.0
  %1461 = vmatprep.subr.mxu0 0.0
  %1462 = vmatpush2.msra.mxu0 0.0
  %1463 = vmatprep.subr.mxu0 0.0
  %1464 = vmatpush2.msra.mxu0 0.0
  %1465 = vmatprep.subr.mxu0 0.0
  %1466 = vmatpush2.msra.mxu0 0.0
  %1467 = vmatprep.subr.mxu0 0.0
  %1468 = vmatpush2.msra.mxu0 0.0
  %1469 = vmatprep.subr.mxu0 0.0
  %1470 = vmatpush2.msra.mxu0 0.0
  %1471 = vmatprep.subr.mxu0 0.0
  %1472 = vmatpush2.msra.mxu0 0.0
  %1473 = vmatprep.subr.mxu0 0.0
  %1474 = vmatpush2.msra.mxu0 0.0
  %1475 = vmatprep.subr.mxu0 0.0
  %1476 = vmatpush2.msra.mxu0 0.0
  %1477 = vmatprep.mubr.f32.mxu0 0.0
  %1478 = vmatmul.mubr.f32.gmra.mxu0 %v1411
  %v1479 = vpop.f32.mrf.mxu0
  %v1480 = vadd.f32 %v1408, %v1479
  %v1481 = vpop.f32.mrf.mxu0
  %1482 = vdwg.mxu0
  %v1483 = vmax.f32 %v1480, 0.0
  %s1484 = scalar_lea.vmem %s3, 320
  %v1485 = vld [vmem:[%s1484] sm:$0xff]
  %v1486 = vld [vmem:[%s1484 + $0x8] sm:$0xff]
  %v1487 = vld [vmem:[%s1484 + $0x10] sm:$0xff]
  %v1488 = vld [vmem:[%s1484 + $0x18] sm:$0xff]
  %v1489 = vld [vmem:[%s1484 + $0x20] sm:$0xff]
  %v1490 = vld [vmem:[%s1484 + $0x28] sm:$0xff]
  %v1491 = vld [vmem:[%s1484 + $0x30] sm:$0xff]
  %v1492 = vld [vmem:[%s1484 + $0x38] sm:$0xff]
  %s1493 = scalar_lea.vmem %s4, 5
  %v1494 = vld [vmem:[%s1493] sm:$0x1]
  %v1496 = vlaneseq
  %v1497 = vshrl.u32 %v1496, 7
  %v1498 = vsub.s32 0, %v1497
  %v1499 = vrot.slane %v1494, %v1498
  %v1502 = vsel %vm127, %v1483, 0
  %1504 = vmatprep.subr.mxu0 0.0
  %1505 = vmatpush1.msra.mxu0 0.0
  %1506 = vmatprep.subr.mxu0 0.0
  %1507 = vmatpush1.msra.mxu0 0.0
  %1508 = vmatprep.subr.mxu0 0.0
  %1509 = vmatpush1.msra.mxu0 0.0
  %1510 = vmatprep.subr.mxu0 0.0
  %1511 = vmatpush1.msra.mxu0 0.0
  %1512 = vmatprep.subr.mxu0 0.0
  %1513 = vmatpush1.msra.mxu0 0.0
  %1514 = vmatprep.subr.mxu0 0.0
  %1515 = vmatpush1.msra.mxu0 0.0
  %1516 = vmatprep.subr.mxu0 0.0
  %1517 = vmatpush1.msra.mxu0 0.0
  %1518 = vmatprep.subr.mxu0 0.0
  %1519 = vmatpush1.msra.mxu0 0.0
  %1520 = vmatprep.subr.mxu0 0.0
  %1521 = vmatpush1.msra.mxu0 %v1492
  %1522 = vmatprep.subr.mxu0 0.0
  %1523 = vmatpush1.msra.mxu0 %v1491
  %1524 = vmatprep.subr.mxu0 0.0
  %1525 = vmatpush1.msra.mxu0 %v1490
  %1526 = vmatprep.subr.mxu0 0.0
  %1527 = vmatpush1.msra.mxu0 %v1489
  %1528 = vmatprep.subr.mxu0 0.0
  %1529 = vmatpush1.msra.mxu0 %v1488
  %1530 = vmatprep.subr.mxu0 0.0
  %1531 = vmatpush1.msra.mxu0 %v1487
  %1532 = vmatprep.subr.mxu0 0.0
  %1533 = vmatpush1.msra.mxu0 %v1486
  %1534 = vmatprep.subr.mxu0 0.0
  %1535 = vmatpush1.msra.mxu0 %v1485
  %1536 = vmatprep.subr.mxu0 0.0
  %1537 = vmatpush2.msra.mxu0 0.0
  %1538 = vmatprep.subr.mxu0 0.0
  %1539 = vmatpush2.msra.mxu0 0.0
  %1540 = vmatprep.subr.mxu0 0.0
  %1541 = vmatpush2.msra.mxu0 0.0
  %1542 = vmatprep.subr.mxu0 0.0
  %1543 = vmatpush2.msra.mxu0 0.0
  %1544 = vmatprep.subr.mxu0 0.0
  %1545 = vmatpush2.msra.mxu0 0.0
  %1546 = vmatprep.subr.mxu0 0.0
  %1547 = vmatpush2.msra.mxu0 0.0
  %1548 = vmatprep.subr.mxu0 0.0
  %1549 = vmatpush2.msra.mxu0 0.0
  %1550 = vmatprep.subr.mxu0 0.0
  %1551 = vmatpush2.msra.mxu0 0.0
  %1552 = vmatprep.subr.mxu0 0.0
  %1553 = vmatpush2.msra.mxu0 0.0
  %1554 = vmatprep.subr.mxu0 0.0
  %1555 = vmatpush2.msra.mxu0 0.0
  %1556 = vmatprep.subr.mxu0 0.0
  %1557 = vmatpush2.msra.mxu0 0.0
  %1558 = vmatprep.subr.mxu0 0.0
  %1559 = vmatpush2.msra.mxu0 0.0
  %1560 = vmatprep.subr.mxu0 0.0
  %1561 = vmatpush2.msra.mxu0 0.0
  %1562 = vmatprep.subr.mxu0 0.0
  %1563 = vmatpush2.msra.mxu0 0.0
  %1564 = vmatprep.subr.mxu0 0.0
  %1565 = vmatpush2.msra.mxu0 0.0
  %1566 = vmatprep.subr.mxu0 0.0
  %1567 = vmatpush2.msra.mxu0 0.0
  %1568 = vmatprep.mubr.f32.mxu0 0.0
  %1569 = vmatmul.mubr.f32.gmra.mxu0 %v1502
  %v1570 = vpop.f32.mrf.mxu0
  %v1571 = vadd.f32 %v1499, %v1570
  %v1572 = vpop.f32.mrf.mxu0
  %1573 = vdwg.mxu0
  %v1574 = vmax.f32 %v1571, 0.0
  %s1575 = scalar_lea.vmem %s5, 320
  %v1576 = vld [vmem:[%s1575] sm:$0xff]
  %v1577 = vld [vmem:[%s1575 + $0x8] sm:$0xff]
  %v1578 = vld [vmem:[%s1575 + $0x10] sm:$0xff]
  %v1579 = vld [vmem:[%s1575 + $0x18] sm:$0xff]
  %v1580 = vld [vmem:[%s1575 + $0x20] sm:$0xff]
  %v1581 = vld [vmem:[%s1575 + $0x28] sm:$0xff]
  %v1582 = vld [vmem:[%s1575 + $0x30] sm:$0xff]
  %v1583 = vld [vmem:[%s1575 + $0x38] sm:$0xff]
  %s1584 = scalar_lea.vmem %s6, 5
  %v1585 = vld [vmem:[%s1584] sm:$0x1]
  %v1587 = vlaneseq
  %v1588 = vshrl.u32 %v1587, 7
  %v1589 = vsub.s32 0, %v1588
  %v1590 = vrot.slane %v1585, %v1589
  %v1593 = vsel %vm127, %v1574, 0
  %1595 = vmatprep.subr.mxu0 0.0
  %1596 = vmatpush1.msra.mxu0 0.0
  %1597 = vmatprep.subr.mxu0 0.0
  %1598 = vmatpush1.msra.mxu0 0.0
  %1599 = vmatprep.subr.mxu0 0.0
  %1600 = vmatpush1.msra.mxu0 0.0
  %1601 = vmatprep.subr.mxu0 0.0
  %1602 = vmatpush1.msra.mxu0 0.0
  %1603 = vmatprep.subr.mxu0 0.0
  %1604 = vmatpush1.msra.mxu0 0.0
  %1605 = vmatprep.subr.mxu0 0.0
  %1606 = vmatpush1.msra.mxu0 0.0
  %1607 = vmatprep.subr.mxu0 0.0
  %1608 = vmatpush1.msra.mxu0 0.0
  %1609 = vmatprep.subr.mxu0 0.0
  %1610 = vmatpush1.msra.mxu0 0.0
  %1611 = vmatprep.subr.mxu0 0.0
  %1612 = vmatpush1.msra.mxu0 %v1583
  %1613 = vmatprep.subr.mxu0 0.0
  %1614 = vmatpush1.msra.mxu0 %v1582
  %1615 = vmatprep.subr.mxu0 0.0
  %1616 = vmatpush1.msra.mxu0 %v1581
  %1617 = vmatprep.subr.mxu0 0.0
  %1618 = vmatpush1.msra.mxu0 %v1580
  %1619 = vmatprep.subr.mxu0 0.0
  %1620 = vmatpush1.msra.mxu0 %v1579
  %1621 = vmatprep.subr.mxu0 0.0
  %1622 = vmatpush1.msra.mxu0 %v1578
  %1623 = vmatprep.subr.mxu0 0.0
  %1624 = vmatpush1.msra.mxu0 %v1577
  %1625 = vmatprep.subr.mxu0 0.0
  %1626 = vmatpush1.msra.mxu0 %v1576
  %1627 = vmatprep.subr.mxu0 0.0
  %1628 = vmatpush2.msra.mxu0 0.0
  %1629 = vmatprep.subr.mxu0 0.0
  %1630 = vmatpush2.msra.mxu0 0.0
  %1631 = vmatprep.subr.mxu0 0.0
  %1632 = vmatpush2.msra.mxu0 0.0
  %1633 = vmatprep.subr.mxu0 0.0
  %1634 = vmatpush2.msra.mxu0 0.0
  %1635 = vmatprep.subr.mxu0 0.0
  %1636 = vmatpush2.msra.mxu0 0.0
  %1637 = vmatprep.subr.mxu0 0.0
  %1638 = vmatpush2.msra.mxu0 0.0
  %1639 = vmatprep.subr.mxu0 0.0
  %1640 = vmatpush2.msra.mxu0 0.0
  %1641 = vmatprep.subr.mxu0 0.0
  %1642 = vmatpush2.msra.mxu0 0.0
  %1643 = vmatprep.subr.mxu0 0.0
  %1644 = vmatpush2.msra.mxu0 0.0
  %1645 = vmatprep.subr.mxu0 0.0
  %1646 = vmatpush2.msra.mxu0 0.0
  %1647 = vmatprep.subr.mxu0 0.0
  %1648 = vmatpush2.msra.mxu0 0.0
  %1649 = vmatprep.subr.mxu0 0.0
  %1650 = vmatpush2.msra.mxu0 0.0
  %1651 = vmatprep.subr.mxu0 0.0
  %1652 = vmatpush2.msra.mxu0 0.0
  %1653 = vmatprep.subr.mxu0 0.0
  %1654 = vmatpush2.msra.mxu0 0.0
  %1655 = vmatprep.subr.mxu0 0.0
  %1656 = vmatpush2.msra.mxu0 0.0
  %1657 = vmatprep.subr.mxu0 0.0
  %1658 = vmatpush2.msra.mxu0 0.0
  %1659 = vmatprep.mubr.f32.mxu0 0.0
  %1660 = vmatmul.mubr.f32.gmra.mxu0 %v1593
  %v1661 = vpop.f32.mrf.mxu0
  %v1662 = vadd.f32 %v1590, %v1661
  %v1663 = vpop.f32.mrf.mxu0
  %1664 = vdwg.mxu0
  %v1665 = vtanh.pop %v1662
  %v1666 = vmul.f32 %v1665, 1.442695
  %v1667 = vpow.pop %v1666
  %v1668 = vmul.f32 %v1398, %v1667
  %1670 = vrot.lane.b32.xlu0 %v1662, 120
  %v1671 = vpop.permute.xlu0 %1670
  %v1673 = vadd.f32 %v1668, %v1671
  %v1674 = vadd.f32 %v1399, %v1665
  %1675 = vst.msk [vmem:[%s7] sm:$0xff] %vm37, %v1673
  %v1676 = vsel %vm37, %v1674, 0.0
  %1677 = vadd.xlane.f32.xlu0 %v1676
  %v1678 = vpop.xlane.xlu0 %1677
  %vm1679 = vcmask 7168
  %1680 = vst.msk [vmem:[%s8] sm:$0xff] %vm1679, %v1678
  // Predicated region
  $region30: #{flow_forward.1} parent=0 // pred_check
    _
  $region31: #{flow_forward.1} parent=0 // pred_check_branch
    %1682 = sbr.rel (0) target = $region33
  $region32: #{flow_forward.1} parent=0 // pred_region
    _
  $region33: #{flow_forward.1} parent=0 // pred_fallthru
    _
  // Predicated region
  $region34: #{flow_forward.1} parent=0 // pred_check
    _
  $region35: #{flow_forward.1} parent=0 // pred_check_branch
    %1684 = sbr.rel (0) target = $region37
  $region36: #{flow_forward.1} parent=0 // pred_region
    _
  $region37: #{flow_forward.1} parent=0 // pred_fallthru
    _
  // Predicated region
  $region38: #{flow_forward.1} parent=0 // pred_check
    _
  $region39: #{flow_forward.1} parent=0 // pred_check_branch
    %1686 = sbr.rel (0) target = $region41
  $region40: #{flow_forward.1} parent=0 // pred_region
    _
  $region41: #{flow_forward.1} parent=0 // pred_fallthru
    _
  // Predicated region
  $region42: #{flow_forward.1} parent=0 // pred_check
    _
  $region43: #{flow_forward.1} parent=0 // pred_check_branch
    %1688 = sbr.rel (0) target = $region45
  $region44: #{flow_forward.1} parent=0 // pred_region
    _
  $region45: #{flow_forward.1} parent=0 // pred_fallthru
    _

</llo_original>
